<compile_context>
chip_gen: v7x
topology: tpu7x:2x2x1
jax: 0.10.0
libtpu: 0.0.40
codegen_flags: <defaults>
</compile_context>

<pallas_src>
import functools

import jax
import jax.numpy as jnp
from jax import lax
from jax.experimental import pallas as pl
from jax.experimental.pallas import tpu as pltpu


# ------------------------------- fused kernel ------------------------------


def _ssa_kernel(x_ref, wqkv_ref, bqkv_ref, wlast_ref, blast_ref,
                gamma_ref, beta_ref, mask_ref, out_ref,
                q_ref, k_ref, v_ref, buf_ref,
                *, qk_scale, tau, thr, thr_attn, spike_dtype):
    """Full spiking-self-attention chain for one batch element.

    Ref shapes (leading batch dim squeezed by the BlockSpec):
      x_ref     : (T, L, D)   f32  input
      wqkv_ref  : (D, 3D)     f32  [Wq^T | Wk^T | Wv^T]
      bqkv_ref  : (1, 3D)     f32  [bq   | bk   | bv  ]
      wlast_ref : (D, D)      f32  Wlast^T
      blast_ref : (1, D)      f32
      gamma_ref : (4, D)      f32  LayerNorm gammas for q, k, v, last
      beta_ref  : (4, D)      f32  LayerNorm betas  for q, k, v, last
      mask_ref  : (D, D)      f32  block-diagonal per-head mask (0/1)
      out_ref   : (T, L, D)   f32  output spikes (0/1)
      q/k/v_ref : (T, L, D)   f32  scratch: LN values, overwritten by spikes
      buf_ref   : (T, L, D)   f32  scratch: attention / last-projection staging
    """
    T, L, D = x_ref.shape
    M = T * L
    inv_tau = 1.0 / tau

    # ---- parameters, loaded once per grid step (hoisted out of all loops) --
    wqkv = wqkv_ref[...]
    bqkv = bqkv_ref[...]
    wlast = wlast_ref[...]
    blast = blast_ref[...]
    gammas = gamma_ref[...]
    betas = beta_ref[...]
    head_mask = mask_ref[...]

    def layernorm(y, i):
        # one-pass variance: mean(y*y) - mean(y)^2  (halves the XLU reductions)
        mean = jnp.mean(y, axis=-1, keepdims=True)
        meansq = jnp.mean(y * y, axis=-1, keepdims=True)
        var = meansq - mean * mean
        return (y - mean) * lax.rsqrt(var + 1e-5) * gammas[i] + betas[i]

    # ---- phase 1: fused q/k/v projection + LayerNorm, batched over T*L -----
    x2 = x_ref[...].reshape(M, D)
    y = jnp.dot(x2, wqkv, preferred_element_type=jnp.float32) + bqkv   # (M,3D)
    # NOTE: for D >= 128 these slices fall on 128-lane-tile boundaries and the
    # extraction is free; at the toy D=32 it is a tiny in-vreg relayout.
    q_ref[...] = layernorm(y[:, 0 * D:1 * D], 0).reshape(T, L, D)
    k_ref[...] = layernorm(y[:, 1 * D:2 * D], 1).reshape(T, L, D)
    v_ref[...] = layernorm(y[:, 2 * D:3 * D], 2).reshape(T, L, D)

    zeros_ld = jnp.zeros((L, D), jnp.float32)

    # ---- phase 2: sequential q/k/v LIF (only true recurrence; element-wise) -
    def qkv_lif_step(t, carry):
        new_carry = []
        for ref, v in zip((q_ref, k_ref, v_ref), carry):
            h = v + (ref[t] - v) * inv_tau
            spike = (h >= thr).astype(jnp.float32)
            ref[t] = spike                       # overwrite LN value with spike
            new_carry.append(jnp.where(h >= thr, 0.0, h))   # hard reset to 0
        return tuple(new_carry)

    _ = lax.fori_loop(0, T, qkv_lif_step, (zeros_ld, zeros_ld, zeros_ld),
                      unroll=True)

    # ---- phase 3: attention, batched over T (block-diagonal re-association) -
    # Per head:  (q_h k_h^T) v_h  ==  q_h (k_h^T v_h); restricting the full
    # (D,D) product k^T v with the block-diagonal head mask is exactly the
    # per-head computation, with no (H,L,L) intermediate and no head reshapes.
    # bf16 is exact here: spikes are 0/1 and k^T v counts are integers <= L.
    # TODO(synk): on v5e/v6e an int8 spike-matmul path would be exact and
    # faster; kept bf16 for portability (v7x MXU has no integer support).
    qb = q_ref[...].astype(spike_dtype)
    kb = k_ref[...].astype(spike_dtype)
    vb = v_ref[...].astype(spike_dtype)
    kv = jnp.einsum("tld,tle->tde", kb, vb,
                    preferred_element_type=jnp.float32)          # (T, D, D)
    kv = kv * head_mask                                          # per-head mask
    y_attn = jnp.einsum("tld,tde->tle", qb, kv.astype(spike_dtype),
                        preferred_element_type=jnp.float32) * qk_scale
    buf_ref[...] = y_attn                                        # (T, L, D)

    # ---- phase 4: sequential attention LIF (threshold = common_thr / 2) ----
    def attn_lif_step(t, v):
        h = v + (buf_ref[t] - v) * inv_tau
        buf_ref[t] = (h >= thr_attn).astype(jnp.float32)
        return jnp.where(h >= thr_attn, 0.0, h)

    _ = lax.fori_loop(0, T, attn_lif_step, zeros_ld, unroll=True)

    # ---- phase 5: last projection + LayerNorm, batched over T*L ------------
    a_s = buf_ref[...].reshape(M, D)
    y_last = jnp.dot(a_s, wlast, preferred_element_type=jnp.float32) + blast
    buf_ref[...] = layernorm(y_last, 3).reshape(T, L, D)

    # ---- phase 6: sequential output LIF -------------------------------------
    def out_lif_step(t, v):
        h = v + (buf_ref[t] - v) * inv_tau
        out_ref[t] = (h >= thr).astype(jnp.float32)
        return jnp.where(h >= thr, 0.0, h)

    _ = lax.fori_loop(0, T, out_lif_step, zeros_ld, unroll=True)


# --------------------------------- wrapper ---------------------------------


def spiking_self_attention_forward(x, params, *, tau, common_thr, heads,
                                   qk_scale):
    """x: (B, T, L, D) float32 -> (B, T, L, D) float32 spikes (0/1)."""
    B, T, L, D = x.shape
    assert D % heads == 0
    dh = D // heads
    x = x.astype(jnp.float32)

    # Fuse the q/k/v projections into one concatenated weight/bias, and stack
    # the LayerNorm parameters of all four LN layers.
    wqkv = jnp.concatenate(
        [params["q"]["wt"], params["k"]["wt"], params["v"]["wt"]], axis=1)
    bqkv = jnp.concatenate(
        [params["q"]["b"], params["k"]["b"], params["v"]["b"]], axis=1)
    gammas = jnp.concatenate(
        [params["q"]["gamma"], params["k"]["gamma"],
         params["v"]["gamma"], params["last"]["gamma"]], axis=0)
    betas = jnp.concatenate(
        [params["q"]["beta"], params["k"]["beta"],
         params["v"]["beta"], params["last"]["beta"]], axis=0)
    wlast = params["last"]["wt"]
    blast = params["last"]["b"]

    # Block-diagonal per-head mask (D, D): 1 where features share a head.
    hid = jnp.arange(D, dtype=jnp.int32) // dh
    head_mask = (hid[:, None] == hid[None, :]).astype(jnp.float32)

    # bf16 spike matmuls are exact only while the k^T v integer counts (<= L)
    # are representable in bf16; otherwise fall back to f32 operands.
    spike_dtype = jnp.bfloat16 if L <= 256 else jnp.float32

    kernel = functools.partial(
        _ssa_kernel, qk_scale=float(qk_scale), tau=float(tau),
        thr=float(common_thr), thr_attn=float(common_thr) / 2.0,
        spike_dtype=spike_dtype)

    rep2 = lambda b: (0, 0)

    cost = pl.CostEstimate(
        flops=12 * B * T * L * D * D,           # qkv + kv + q@kv + last
        transcendentals=4 * B * T * L,          # one rsqrt per row per LN
        bytes_accessed=4 * (2 * B * T * L * D + 4 * D * D + 12 * D),
    )

    # NOTE: with D a multiple of 128 the (·, D) blocks below are lane-dense;
    # at the toy D=32 the stores are masked but negligibly small.
    return pl.pallas_call(
        kernel,
        out_shape=jax.ShapeDtypeStruct((B, T, L, D), jnp.float32),
        grid_spec=pltpu.PrefetchScalarGridSpec(
            num_scalar_prefetch=0,
            grid=(B,),
            in_specs=[
                pl.BlockSpec((None, T, L, D), lambda b: (b, 0, 0, 0)),
                pl.BlockSpec((D, 3 * D), rep2),
                pl.BlockSpec((1, 3 * D), rep2),
                pl.BlockSpec((D, D), rep2),
                pl.BlockSpec((1, D), rep2),
                pl.BlockSpec((4, D), rep2),
                pl.BlockSpec((4, D), rep2),
                pl.BlockSpec((D, D), rep2),
            ],
            out_specs=pl.BlockSpec((None, T, L, D), lambda b: (b, 0, 0, 0)),
            scratch_shapes=[
                pltpu.VMEM((T, L, D), jnp.float32),   # q: LN values -> spikes
                pltpu.VMEM((T, L, D), jnp.float32),   # k: LN values -> spikes
                pltpu.VMEM((T, L, D), jnp.float32),   # v: LN values -> spikes
                pltpu.VMEM((T, L, D), jnp.float32),   # attention / last staging
            ],
        ),
        compiler_params=pltpu.CompilerParams(
            dimension_semantics=("parallel",)),
        cost_estimate=cost,
    )(x, wqkv, bqkv, wlast, blast, gammas, betas, head_mask)


# ------------------------- deterministic parameters -------------------------


def make_params(key, dim):
    def branch(k):
        kw, kb = jax.random.split(k)
        w = jax.random.normal(kw, (dim, dim), jnp.float32) / jnp.sqrt(dim)
        b = jax.random.normal(kb, (dim,), jnp.float32) * 0.02
        return {
            "wt": jnp.transpose(w),                    # nn.Linear: y = x @ W^T + b
            "b": b.reshape(1, dim),
            "gamma": jnp.ones((1, dim), jnp.float32),  # nn.LayerNorm init
            "beta": jnp.zeros((1, dim), jnp.float32),
        }

    kq, kk, kv, kl = jax.random.split(key, 4)
    return {"q": branch(kq), "k": branch(kk), "v": branch(kv),
            "last": branch(kl)}


# ----------------------------------- main -----------------------------------


if __name__ == "__main__":
    B, T, L, D = 2, 4, 8, 32
    heads = 8
    tau = 2.0
    common_thr = 1.0
    qk_scale = 0.25

    key = jax.random.PRNGKey(0)
    k_x, k_p = jax.random.split(key)
    x = jax.random.normal(k_x, (B, T, L, D), jnp.float32)
    params = make_params(k_p, D)

    fwd = jax.jit(functools.partial(spiking_self_attention_forward,
                                    tau=tau, common_thr=common_thr,
                                    heads=heads, qk_scale=qk_scale))
    out = fwd(x, params)
    out = jax.block_until_ready(out)

    assert out.shape == (B, T, L, D), out.shape
    assert bool(jnp.all(jnp.isfinite(out)))
    # final stage is an LIF node, so the output must be binary spikes
    assert bool(jnp.all((out == 0.0) | (out == 1.0)))

    # TODO(synk): ATan surrogate gradient / detach_reset only affect backward;
    # not represented in this forward-only kernel.

    print("KERNEL_OK")
</pallas_src>

<mosaic_0001>
module attributes {stable_mosaic.version = 11 : i64} {
  func.func @_ssa_kernel(%arg0: i32, %arg1: memref<1x4x8x32xf32, #tpu.memory_space<vmem>>, %arg2: memref<32x96xf32, #tpu.memory_space<vmem>>, %arg3: memref<1x96xf32, #tpu.memory_space<vmem>>, %arg4: memref<32x32xf32, #tpu.memory_space<vmem>>, %arg5: memref<1x32xf32, #tpu.memory_space<vmem>>, %arg6: memref<4x32xf32, #tpu.memory_space<vmem>>, %arg7: memref<4x32xf32, #tpu.memory_space<vmem>>, %arg8: memref<32x32xf32, #tpu.memory_space<vmem>>, %arg9: memref<1x4x8x32xf32, #tpu.memory_space<vmem>>, %arg10: memref<4x8x32xf32, #tpu.memory_space<vmem>>, %arg11: memref<4x8x32xf32, #tpu.memory_space<vmem>>, %arg12: memref<4x8x32xf32, #tpu.memory_space<vmem>>, %arg13: memref<4x8x32xf32, #tpu.memory_space<vmem>>) attributes {dimension_semantics = [#tpu.dimension_semantics<parallel>], iteration_bounds = array<i64: 2>, scalar_prefetch = 0 : i64, scratch_operands = 4 : i64, tpu.core_type = #tpu.core_type<tc>, window_params = [{transform_indices = @transform_0, window_bounds = array<i64: 1, 4, 8, 32>}, {pipeline_mode = #tpu.pipeline_mode<synchronous>, transform_indices = @transform_1, window_bounds = array<i64: 32, 96>}, {pipeline_mode = #tpu.pipeline_mode<synchronous>, transform_indices = @transform_2, window_bounds = array<i64: 1, 96>}, {pipeline_mode = #tpu.pipeline_mode<synchronous>, transform_indices = @transform_3, window_bounds = array<i64: 32, 32>}, {pipeline_mode = #tpu.pipeline_mode<synchronous>, transform_indices = @transform_4, window_bounds = array<i64: 1, 32>}, {pipeline_mode = #tpu.pipeline_mode<synchronous>, transform_indices = @transform_5, window_bounds = array<i64: 4, 32>}, {pipeline_mode = #tpu.pipeline_mode<synchronous>, transform_indices = @transform_6, window_bounds = array<i64: 4, 32>}, {pipeline_mode = #tpu.pipeline_mode<synchronous>, transform_indices = @transform_7, window_bounds = array<i64: 32, 32>}, {transform_indices = @transform_8, window_bounds = array<i64: 1, 4, 8, 32>}]} {
    %c0 = arith.constant 0 : index
    %c0_0 = arith.constant 0 : index
    %0 = vector.load %arg2[%c0, %c0_0] : memref<32x96xf32, #tpu.memory_space<vmem>>, vector<32x96xf32>
    %c0_1 = arith.constant 0 : index
    %c0_2 = arith.constant 0 : index
    %1 = vector.load %arg3[%c0_1, %c0_2] : memref<1x96xf32, #tpu.memory_space<vmem>>, vector<1x96xf32>
    %c0_3 = arith.constant 0 : index
    %c0_4 = arith.constant 0 : index
    %2 = vector.load %arg4[%c0_3, %c0_4] : memref<32x32xf32, #tpu.memory_space<vmem>>, vector<32x32xf32>
    %c0_5 = arith.constant 0 : index
    %c0_6 = arith.constant 0 : index
    %3 = vector.load %arg5[%c0_5, %c0_6] : memref<1x32xf32, #tpu.memory_space<vmem>>, vector<1x32xf32>
    %c0_7 = arith.constant 0 : index
    %c0_8 = arith.constant 0 : index
    %4 = vector.load %arg6[%c0_7, %c0_8] : memref<4x32xf32, #tpu.memory_space<vmem>>, vector<4x32xf32>
    %c0_9 = arith.constant 0 : index
    %c0_10 = arith.constant 0 : index
    %5 = vector.load %arg7[%c0_9, %c0_10] : memref<4x32xf32, #tpu.memory_space<vmem>>, vector<4x32xf32>
    %c0_11 = arith.constant 0 : index
    %c0_12 = arith.constant 0 : index
    %6 = vector.load %arg8[%c0_11, %c0_12] : memref<32x32xf32, #tpu.memory_space<vmem>>, vector<32x32xf32>
    %c0_13 = arith.constant 0 : index
    %c0_14 = arith.constant 0 : index
    %c0_15 = arith.constant 0 : index
    %c0_16 = arith.constant 0 : index
    %7 = vector.load %arg1[%c0_13, %c0_14, %c0_15, %c0_16] : memref<1x4x8x32xf32, #tpu.memory_space<vmem>>, vector<1x4x8x32xf32>
    %8 = vector.shape_cast %7 : vector<1x4x8x32xf32> to vector<4x8x32xf32>
    %9 = vector.shape_cast %8 : vector<4x8x32xf32> to vector<32x32xf32>
    %cst = arith.constant dense<0.000000e+00> : vector<32x96xf32>
    %10 = tpu.matmul %9, %0, %cst {dimension_numbers = #tpu.dot_dimension_numbers<[1], [0], [0], [1], [0, 0, 1, 1], [], []>} : vector<32x32xf32>, vector<32x96xf32>, vector<32x96xf32> -> vector<32x96xf32>
    %11 = vector.broadcast %1 : vector<1x96xf32> to vector<32x96xf32>
    %12 = arith.addf %10, %11 : vector<32x96xf32>
    %13 = vector.extract_strided_slice %12 {offsets = [0, 0], sizes = [32, 32], strides = [1, 1]} : vector<32x96xf32> to vector<32x32xf32>
    %cst_17 = arith.constant dense<0.000000e+00> : vector<32xf32>
    %14 = vector.multi_reduction <add>, %13, %cst_17 [1] : vector<32x32xf32> to vector<32xf32>
    %15 = vector.shape_cast %14 : vector<32xf32> to vector<32x1xf32>
    %cst_18 = arith.constant 3.200000e+01 : f32
    %16 = vector.broadcast %cst_18 : f32 to vector<32x1xf32>
    %17 = arith.divf %15, %16 : vector<32x1xf32>
    %18 = arith.mulf %13, %13 : vector<32x32xf32>
    %cst_19 = arith.constant dense<0.000000e+00> : vector<32xf32>
    %19 = vector.multi_reduction <add>, %18, %cst_19 [1] : vector<32x32xf32> to vector<32xf32>
    %20 = vector.shape_cast %19 : vector<32xf32> to vector<32x1xf32>
    %cst_20 = arith.constant 3.200000e+01 : f32
    %21 = vector.broadcast %cst_20 : f32 to vector<32x1xf32>
    %22 = arith.divf %20, %21 : vector<32x1xf32>
    %23 = arith.mulf %17, %17 : vector<32x1xf32>
    %24 = arith.subf %22, %23 : vector<32x1xf32>
    %25 = vector.broadcast %17 : vector<32x1xf32> to vector<32x32xf32>
    %26 = arith.subf %13, %25 : vector<32x32xf32>
    %cst_21 = arith.constant 9.99999974E-6 : f32
    %27 = vector.broadcast %cst_21 : f32 to vector<32x1xf32>
    %28 = arith.addf %24, %27 : vector<32x1xf32>
    %29 = math.rsqrt %28 : vector<32x1xf32>
    %30 = vector.broadcast %29 : vector<32x1xf32> to vector<32x32xf32>
    %31 = arith.mulf %26, %30 : vector<32x32xf32>
    %32 = vector.extract_strided_slice %4 {offsets = [0, 0], sizes = [1, 32], strides = [1, 1]} : vector<4x32xf32> to vector<1x32xf32>
    %33 = vector.shape_cast %32 : vector<1x32xf32> to vector<32xf32>
    %34 = vector.shape_cast %33 : vector<32xf32> to vector<1x32xf32>
    %35 = vector.broadcast %34 : vector<1x32xf32> to vector<32x32xf32>
    %36 = arith.mulf %31, %35 : vector<32x32xf32>
    %37 = vector.extract_strided_slice %5 {offsets = [0, 0], sizes = [1, 32], strides = [1, 1]} : vector<4x32xf32> to vector<1x32xf32>
    %38 = vector.shape_cast %37 : vector<1x32xf32> to vector<32xf32>
    %39 = vector.shape_cast %38 : vector<32xf32> to vector<1x32xf32>
    %40 = vector.broadcast %39 : vector<1x32xf32> to vector<32x32xf32>
    %41 = arith.addf %36, %40 : vector<32x32xf32>
    %42 = vector.shape_cast %41 : vector<32x32xf32> to vector<4x8x32xf32>
    %c0_22 = arith.constant 0 : index
    %c0_23 = arith.constant 0 : index
    %c0_24 = arith.constant 0 : index
    %43 = vector.load %arg10[%c0_22, %c0_23, %c0_24] : memref<4x8x32xf32, #tpu.memory_space<vmem>>, vector<4x8x32xf32>
    tpu.vector_store %arg10[%c0_22, %c0_23, %c0_24], %42 {strides = array<i32>} : memref<4x8x32xf32, #tpu.memory_space<vmem>>, vector<4x8x32xf32>,
    %44 = vector.extract_strided_slice %12 {offsets = [0, 32], sizes = [32, 32], strides = [1, 1]} : vector<32x96xf32> to vector<32x32xf32>
    %cst_25 = arith.constant dense<0.000000e+00> : vector<32xf32>
    %45 = vector.multi_reduction <add>, %44, %cst_25 [1] : vector<32x32xf32> to vector<32xf32>
    %46 = vector.shape_cast %45 : vector<32xf32> to vector<32x1xf32>
    %cst_26 = arith.constant 3.200000e+01 : f32
    %47 = vector.broadcast %cst_26 : f32 to vector<32x1xf32>
    %48 = arith.divf %46, %47 : vector<32x1xf32>
    %49 = arith.mulf %44, %44 : vector<32x32xf32>
    %cst_27 = arith.constant dense<0.000000e+00> : vector<32xf32>
    %50 = vector.multi_reduction <add>, %49, %cst_27 [1] : vector<32x32xf32> to vector<32xf32>
    %51 = vector.shape_cast %50 : vector<32xf32> to vector<32x1xf32>
    %cst_28 = arith.constant 3.200000e+01 : f32
    %52 = vector.broadcast %cst_28 : f32 to vector<32x1xf32>
    %53 = arith.divf %51, %52 : vector<32x1xf32>
    %54 = arith.mulf %48, %48 : vector<32x1xf32>
    %55 = arith.subf %53, %54 : vector<32x1xf32>
    %56 = vector.broadcast %48 : vector<32x1xf32> to vector<32x32xf32>
    %57 = arith.subf %44, %56 : vector<32x32xf32>
    %cst_29 = arith.constant 9.99999974E-6 : f32
    %58 = vector.broadcast %cst_29 : f32 to vector<32x1xf32>
    %59 = arith.addf %55, %58 : vector<32x1xf32>
    %60 = math.rsqrt %59 : vector<32x1xf32>
    %61 = vector.broadcast %60 : vector<32x1xf32> to vector<32x32xf32>
    %62 = arith.mulf %57, %61 : vector<32x32xf32>
    %63 = vector.extract_strided_slice %4 {offsets = [1, 0], sizes = [1, 32], strides = [1, 1]} : vector<4x32xf32> to vector<1x32xf32>
    %64 = vector.shape_cast %63 : vector<1x32xf32> to vector<32xf32>
    %65 = vector.shape_cast %64 : vector<32xf32> to vector<1x32xf32>
    %66 = vector.broadcast %65 : vector<1x32xf32> to vector<32x32xf32>
    %67 = arith.mulf %62, %66 : vector<32x32xf32>
    %68 = vector.extract_strided_slice %5 {offsets = [1, 0], sizes = [1, 32], strides = [1, 1]} : vector<4x32xf32> to vector<1x32xf32>
    %69 = vector.shape_cast %68 : vector<1x32xf32> to vector<32xf32>
    %70 = vector.shape_cast %69 : vector<32xf32> to vector<1x32xf32>
    %71 = vector.broadcast %70 : vector<1x32xf32> to vector<32x32xf32>
    %72 = arith.addf %67, %71 : vector<32x32xf32>
    %73 = vector.shape_cast %72 : vector<32x32xf32> to vector<4x8x32xf32>
    %c0_30 = arith.constant 0 : index
    %c0_31 = arith.constant 0 : index
    %c0_32 = arith.constant 0 : index
    %74 = vector.load %arg11[%c0_30, %c0_31, %c0_32] : memref<4x8x32xf32, #tpu.memory_space<vmem>>, vector<4x8x32xf32>
    tpu.vector_store %arg11[%c0_30, %c0_31, %c0_32], %73 {strides = array<i32>} : memref<4x8x32xf32, #tpu.memory_space<vmem>>, vector<4x8x32xf32>,
    %75 = vector.extract_strided_slice %12 {offsets = [0, 64], sizes = [32, 32], strides = [1, 1]} : vector<32x96xf32> to vector<32x32xf32>
    %cst_33 = arith.constant dense<0.000000e+00> : vector<32xf32>
    %76 = vector.multi_reduction <add>, %75, %cst_33 [1] : vector<32x32xf32> to vector<32xf32>
    %77 = vector.shape_cast %76 : vector<32xf32> to vector<32x1xf32>
    %cst_34 = arith.constant 3.200000e+01 : f32
    %78 = vector.broadcast %cst_34 : f32 to vector<32x1xf32>
    %79 = arith.divf %77, %78 : vector<32x1xf32>
    %80 = arith.mulf %75, %75 : vector<32x32xf32>
    %cst_35 = arith.constant dense<0.000000e+00> : vector<32xf32>
    %81 = vector.multi_reduction <add>, %80, %cst_35 [1] : vector<32x32xf32> to vector<32xf32>
    %82 = vector.shape_cast %81 : vector<32xf32> to vector<32x1xf32>
    %cst_36 = arith.constant 3.200000e+01 : f32
    %83 = vector.broadcast %cst_36 : f32 to vector<32x1xf32>
    %84 = arith.divf %82, %83 : vector<32x1xf32>
    %85 = arith.mulf %79, %79 : vector<32x1xf32>
    %86 = arith.subf %84, %85 : vector<32x1xf32>
    %87 = vector.broadcast %79 : vector<32x1xf32> to vector<32x32xf32>
    %88 = arith.subf %75, %87 : vector<32x32xf32>
    %cst_37 = arith.constant 9.99999974E-6 : f32
    %89 = vector.broadcast %cst_37 : f32 to vector<32x1xf32>
    %90 = arith.addf %86, %89 : vector<32x1xf32>
    %91 = math.rsqrt %90 : vector<32x1xf32>
    %92 = vector.broadcast %91 : vector<32x1xf32> to vector<32x32xf32>
    %93 = arith.mulf %88, %92 : vector<32x32xf32>
    %94 = vector.extract_strided_slice %4 {offsets = [2, 0], sizes = [1, 32], strides = [1, 1]} : vector<4x32xf32> to vector<1x32xf32>
    %95 = vector.shape_cast %94 : vector<1x32xf32> to vector<32xf32>
    %96 = vector.shape_cast %95 : vector<32xf32> to vector<1x32xf32>
    %97 = vector.broadcast %96 : vector<1x32xf32> to vector<32x32xf32>
    %98 = arith.mulf %93, %97 : vector<32x32xf32>
    %99 = vector.extract_strided_slice %5 {offsets = [2, 0], sizes = [1, 32], strides = [1, 1]} : vector<4x32xf32> to vector<1x32xf32>
    %100 = vector.shape_cast %99 : vector<1x32xf32> to vector<32xf32>
    %101 = vector.shape_cast %100 : vector<32xf32> to vector<1x32xf32>
    %102 = vector.broadcast %101 : vector<1x32xf32> to vector<32x32xf32>
    %103 = arith.addf %98, %102 : vector<32x32xf32>
    %104 = vector.shape_cast %103 : vector<32x32xf32> to vector<4x8x32xf32>
    %c0_38 = arith.constant 0 : index
    %c0_39 = arith.constant 0 : index
    %c0_40 = arith.constant 0 : index
    %105 = vector.load %arg12[%c0_38, %c0_39, %c0_40] : memref<4x8x32xf32, #tpu.memory_space<vmem>>, vector<4x8x32xf32>
    tpu.vector_store %arg12[%c0_38, %c0_39, %c0_40], %104 {strides = array<i32>} : memref<4x8x32xf32, #tpu.memory_space<vmem>>, vector<4x8x32xf32>,
    %cst_41 = arith.constant 0.000000e+00 : f32
    %106 = vector.broadcast %cst_41 : f32 to vector<8x32xf32>
    %c0_i32 = arith.constant 0 : i32
    %107 = arith.index_cast %c0_i32 : i32 to index
    %c0_42 = arith.constant 0 : index
    %c0_43 = arith.constant 0 : index
    %108 = vector.load %arg10[%107, %c0_42, %c0_43] : memref<4x8x32xf32, #tpu.memory_space<vmem>>, vector<1x8x32xf32>
    %109 = vector.shape_cast %108 : vector<1x8x32xf32> to vector<8x32xf32>
    %110 = arith.subf %109, %106 : vector<8x32xf32>
    %cst_44 = arith.constant 5.000000e-01 : f32
    %111 = vector.broadcast %cst_44 : f32 to vector<8x32xf32>
    %112 = arith.mulf %110, %111 : vector<8x32xf32>
    %113 = arith.addf %106, %112 : vector<8x32xf32>
    %cst_45 = arith.constant 1.000000e+00 : f32
    %114 = vector.broadcast %cst_45 : f32 to vector<8x32xf32>
    %115 = arith.cmpf oge, %113, %114 : vector<8x32xf32>
    %116 = arith.extui %115 : vector<8x32xi1> to vector<8x32xi32>
    %117 = arith.sitofp %116 : vector<8x32xi32> to vector<8x32xf32>
    %118 = arith.index_cast %c0_i32 : i32 to index
    %c0_46 = arith.constant 0 : index
    %c0_47 = arith.constant 0 : index
    %119 = vector.load %arg10[%118, %c0_46, %c0_47] : memref<4x8x32xf32, #tpu.memory_space<vmem>>, vector<1x8x32xf32>
    %120 = vector.shape_cast %119 : vector<1x8x32xf32> to vector<8x32xf32>
    %121 = vector.shape_cast %117 : vector<8x32xf32> to vector<1x8x32xf32>
    tpu.vector_store %arg10[%118, %c0_46, %c0_47], %121 {strides = array<i32>} : memref<4x8x32xf32, #tpu.memory_space<vmem>>, vector<1x8x32xf32>,
    %cst_48 = arith.constant 1.000000e+00 : f32
    %122 = vector.broadcast %cst_48 : f32 to vector<8x32xf32>
    %123 = arith.cmpf oge, %113, %122 : vector<8x32xf32>
    %cst_49 = arith.constant 0.000000e+00 : f32
    %124 = vector.broadcast %cst_49 : f32 to vector<8x32xf32>
    %125 = arith.select %123, %124, %113 : vector<8x32xi1>, vector<8x32xf32>
    %126 = arith.index_cast %c0_i32 : i32 to index
    %c0_50 = arith.constant 0 : index
    %c0_51 = arith.constant 0 : index
    %127 = vector.load %arg11[%126, %c0_50, %c0_51] : memref<4x8x32xf32, #tpu.memory_space<vmem>>, vector<1x8x32xf32>
    %128 = vector.shape_cast %127 : vector<1x8x32xf32> to vector<8x32xf32>
    %129 = arith.subf %128, %106 : vector<8x32xf32>
    %cst_52 = arith.constant 5.000000e-01 : f32
    %130 = vector.broadcast %cst_52 : f32 to vector<8x32xf32>
    %131 = arith.mulf %129, %130 : vector<8x32xf32>
    %132 = arith.addf %106, %131 : vector<8x32xf32>
    %cst_53 = arith.constant 1.000000e+00 : f32
    %133 = vector.broadcast %cst_53 : f32 to vector<8x32xf32>
    %134 = arith.cmpf oge, %132, %133 : vector<8x32xf32>
    %135 = arith.extui %134 : vector<8x32xi1> to vector<8x32xi32>
    %136 = arith.sitofp %135 : vector<8x32xi32> to vector<8x32xf32>
    %137 = arith.index_cast %c0_i32 : i32 to index
    %c0_54 = arith.constant 0 : index
    %c0_55 = arith.constant 0 : index
    %138 = vector.load %arg11[%137, %c0_54, %c0_55] : memref<4x8x32xf32, #tpu.memory_space<vmem>>, vector<1x8x32xf32>
    %139 = vector.shape_cast %138 : vector<1x8x32xf32> to vector<8x32xf32>
    %140 = vector.shape_cast %136 : vector<8x32xf32> to vector<1x8x32xf32>
    tpu.vector_store %arg11[%137, %c0_54, %c0_55], %140 {strides = array<i32>} : memref<4x8x32xf32, #tpu.memory_space<vmem>>, vector<1x8x32xf32>,
    %cst_56 = arith.constant 1.000000e+00 : f32
    %141 = vector.broadcast %cst_56 : f32 to vector<8x32xf32>
    %142 = arith.cmpf oge, %132, %141 : vector<8x32xf32>
    %cst_57 = arith.constant 0.000000e+00 : f32
    %143 = vector.broadcast %cst_57 : f32 to vector<8x32xf32>
    %144 = arith.select %142, %143, %132 : vector<8x32xi1>, vector<8x32xf32>
    %145 = arith.index_cast %c0_i32 : i32 to index
    %c0_58 = arith.constant 0 : index
    %c0_59 = arith.constant 0 : index
    %146 = vector.load %arg12[%145, %c0_58, %c0_59] : memref<4x8x32xf32, #tpu.memory_space<vmem>>, vector<1x8x32xf32>
    %147 = vector.shape_cast %146 : vector<1x8x32xf32> to vector<8x32xf32>
    %148 = arith.subf %147, %106 : vector<8x32xf32>
    %cst_60 = arith.constant 5.000000e-01 : f32
    %149 = vector.broadcast %cst_60 : f32 to vector<8x32xf32>
    %150 = arith.mulf %148, %149 : vector<8x32xf32>
    %151 = arith.addf %106, %150 : vector<8x32xf32>
    %cst_61 = arith.constant 1.000000e+00 : f32
    %152 = vector.broadcast %cst_61 : f32 to vector<8x32xf32>
    %153 = arith.cmpf oge, %151, %152 : vector<8x32xf32>
    %154 = arith.extui %153 : vector<8x32xi1> to vector<8x32xi32>
    %155 = arith.sitofp %154 : vector<8x32xi32> to vector<8x32xf32>
    %156 = arith.index_cast %c0_i32 : i32 to index
    %c0_62 = arith.constant 0 : index
    %c0_63 = arith.constant 0 : index
    %157 = vector.load %arg12[%156, %c0_62, %c0_63] : memref<4x8x32xf32, #tpu.memory_space<vmem>>, vector<1x8x32xf32>
    %158 = vector.shape_cast %157 : vector<1x8x32xf32> to vector<8x32xf32>
    %159 = vector.shape_cast %155 : vector<8x32xf32> to vector<1x8x32xf32>
    tpu.vector_store %arg12[%156, %c0_62, %c0_63], %159 {strides = array<i32>} : memref<4x8x32xf32, #tpu.memory_space<vmem>>, vector<1x8x32xf32>,
    %cst_64 = arith.constant 1.000000e+00 : f32
    %160 = vector.broadcast %cst_64 : f32 to vector<8x32xf32>
    %161 = arith.cmpf oge, %151, %160 : vector<8x32xf32>
    %cst_65 = arith.constant 0.000000e+00 : f32
    %162 = vector.broadcast %cst_65 : f32 to vector<8x32xf32>
    %163 = arith.select %161, %162, %151 : vector<8x32xi1>, vector<8x32xf32>
    %c1_i32 = arith.constant 1 : i32
    %164 = arith.index_cast %c1_i32 : i32 to index
    %c0_66 = arith.constant 0 : index
    %c0_67 = arith.constant 0 : index
    %165 = vector.load %arg10[%164, %c0_66, %c0_67] : memref<4x8x32xf32, #tpu.memory_space<vmem>>, vector<1x8x32xf32>
    %166 = vector.shape_cast %165 : vector<1x8x32xf32> to vector<8x32xf32>
    %167 = arith.subf %166, %125 : vector<8x32xf32>
    %cst_68 = arith.constant 5.000000e-01 : f32
    %168 = vector.broadcast %cst_68 : f32 to vector<8x32xf32>
    %169 = arith.mulf %167, %168 : vector<8x32xf32>
    %170 = arith.addf %125, %169 : vector<8x32xf32>
    %cst_69 = arith.constant 1.000000e+00 : f32
    %171 = vector.broadcast %cst_69 : f32 to vector<8x32xf32>
    %172 = arith.cmpf oge, %170, %171 : vector<8x32xf32>
    %173 = arith.extui %172 : vector<8x32xi1> to vector<8x32xi32>
    %174 = arith.sitofp %173 : vector<8x32xi32> to vector<8x32xf32>
    %175 = arith.index_cast %c1_i32 : i32 to index
    %c0_70 = arith.constant 0 : index
    %c0_71 = arith.constant 0 : index
    %176 = vector.load %arg10[%175, %c0_70, %c0_71] : memref<4x8x32xf32, #tpu.memory_space<vmem>>, vector<1x8x32xf32>
    %177 = vector.shape_cast %176 : vector<1x8x32xf32> to vector<8x32xf32>
    %178 = vector.shape_cast %174 : vector<8x32xf32> to vector<1x8x32xf32>
    tpu.vector_store %arg10[%175, %c0_70, %c0_71], %178 {strides = array<i32>} : memref<4x8x32xf32, #tpu.memory_space<vmem>>, vector<1x8x32xf32>,
    %cst_72 = arith.constant 1.000000e+00 : f32
    %179 = vector.broadcast %cst_72 : f32 to vector<8x32xf32>
    %180 = arith.cmpf oge, %170, %179 : vector<8x32xf32>
    %cst_73 = arith.constant 0.000000e+00 : f32
    %181 = vector.broadcast %cst_73 : f32 to vector<8x32xf32>
    %182 = arith.select %180, %181, %170 : vector<8x32xi1>, vector<8x32xf32>
    %183 = arith.index_cast %c1_i32 : i32 to index
    %c0_74 = arith.constant 0 : index
    %c0_75 = arith.constant 0 : index
    %184 = vector.load %arg11[%183, %c0_74, %c0_75] : memref<4x8x32xf32, #tpu.memory_space<vmem>>, vector<1x8x32xf32>
    %185 = vector.shape_cast %184 : vector<1x8x32xf32> to vector<8x32xf32>
    %186 = arith.subf %185, %144 : vector<8x32xf32>
    %cst_76 = arith.constant 5.000000e-01 : f32
    %187 = vector.broadcast %cst_76 : f32 to vector<8x32xf32>
    %188 = arith.mulf %186, %187 : vector<8x32xf32>
    %189 = arith.addf %144, %188 : vector<8x32xf32>
    %cst_77 = arith.constant 1.000000e+00 : f32
    %190 = vector.broadcast %cst_77 : f32 to vector<8x32xf32>
    %191 = arith.cmpf oge, %189, %190 : vector<8x32xf32>
    %192 = arith.extui %191 : vector<8x32xi1> to vector<8x32xi32>
    %193 = arith.sitofp %192 : vector<8x32xi32> to vector<8x32xf32>
    %194 = arith.index_cast %c1_i32 : i32 to index
    %c0_78 = arith.constant 0 : index
    %c0_79 = arith.constant 0 : index
    %195 = vector.load %arg11[%194, %c0_78, %c0_79] : memref<4x8x32xf32, #tpu.memory_space<vmem>>, vector<1x8x32xf32>
    %196 = vector.shape_cast %195 : vector<1x8x32xf32> to vector<8x32xf32>
    %197 = vector.shape_cast %193 : vector<8x32xf32> to vector<1x8x32xf32>
    tpu.vector_store %arg11[%194, %c0_78, %c0_79], %197 {strides = array<i32>} : memref<4x8x32xf32, #tpu.memory_space<vmem>>, vector<1x8x32xf32>,
    %cst_80 = arith.constant 1.000000e+00 : f32
    %198 = vector.broadcast %cst_80 : f32 to vector<8x32xf32>
    %199 = arith.cmpf oge, %189, %198 : vector<8x32xf32>
    %cst_81 = arith.constant 0.000000e+00 : f32
    %200 = vector.broadcast %cst_81 : f32 to vector<8x32xf32>
    %201 = arith.select %199, %200, %189 : vector<8x32xi1>, vector<8x32xf32>
    %202 = arith.index_cast %c1_i32 : i32 to index
    %c0_82 = arith.constant 0 : index
    %c0_83 = arith.constant 0 : index
    %203 = vector.load %arg12[%202, %c0_82, %c0_83] : memref<4x8x32xf32, #tpu.memory_space<vmem>>, vector<1x8x32xf32>
    %204 = vector.shape_cast %203 : vector<1x8x32xf32> to vector<8x32xf32>
    %205 = arith.subf %204, %163 : vector<8x32xf32>
    %cst_84 = arith.constant 5.000000e-01 : f32
    %206 = vector.broadcast %cst_84 : f32 to vector<8x32xf32>
    %207 = arith.mulf %205, %206 : vector<8x32xf32>
    %208 = arith.addf %163, %207 : vector<8x32xf32>
    %cst_85 = arith.constant 1.000000e+00 : f32
    %209 = vector.broadcast %cst_85 : f32 to vector<8x32xf32>
    %210 = arith.cmpf oge, %208, %209 : vector<8x32xf32>
    %211 = arith.extui %210 : vector<8x32xi1> to vector<8x32xi32>
    %212 = arith.sitofp %211 : vector<8x32xi32> to vector<8x32xf32>
    %213 = arith.index_cast %c1_i32 : i32 to index
    %c0_86 = arith.constant 0 : index
    %c0_87 = arith.constant 0 : index
    %214 = vector.load %arg12[%213, %c0_86, %c0_87] : memref<4x8x32xf32, #tpu.memory_space<vmem>>, vector<1x8x32xf32>
    %215 = vector.shape_cast %214 : vector<1x8x32xf32> to vector<8x32xf32>
    %216 = vector.shape_cast %212 : vector<8x32xf32> to vector<1x8x32xf32>
    tpu.vector_store %arg12[%213, %c0_86, %c0_87], %216 {strides = array<i32>} : memref<4x8x32xf32, #tpu.memory_space<vmem>>, vector<1x8x32xf32>,
    %cst_88 = arith.constant 1.000000e+00 : f32
    %217 = vector.broadcast %cst_88 : f32 to vector<8x32xf32>
    %218 = arith.cmpf oge, %208, %217 : vector<8x32xf32>
    %cst_89 = arith.constant 0.000000e+00 : f32
    %219 = vector.broadcast %cst_89 : f32 to vector<8x32xf32>
    %220 = arith.select %218, %219, %208 : vector<8x32xi1>, vector<8x32xf32>
    %c2_i32 = arith.constant 2 : i32
    %221 = arith.index_cast %c2_i32 : i32 to index
    %c0_90 = arith.constant 0 : index
    %c0_91 = arith.constant 0 : index
    %222 = vector.load %arg10[%221, %c0_90, %c0_91] : memref<4x8x32xf32, #tpu.memory_space<vmem>>, vector<1x8x32xf32>
    %223 = vector.shape_cast %222 : vector<1x8x32xf32> to vector<8x32xf32>
    %224 = arith.subf %223, %182 : vector<8x32xf32>
    %cst_92 = arith.constant 5.000000e-01 : f32
    %225 = vector.broadcast %cst_92 : f32 to vector<8x32xf32>
    %226 = arith.mulf %224, %225 : vector<8x32xf32>
    %227 = arith.addf %182, %226 : vector<8x32xf32>
    %cst_93 = arith.constant 1.000000e+00 : f32
    %228 = vector.broadcast %cst_93 : f32 to vector<8x32xf32>
    %229 = arith.cmpf oge, %227, %228 : vector<8x32xf32>
    %230 = arith.extui %229 : vector<8x32xi1> to vector<8x32xi32>
    %231 = arith.sitofp %230 : vector<8x32xi32> to vector<8x32xf32>
    %232 = arith.index_cast %c2_i32 : i32 to index
    %c0_94 = arith.constant 0 : index
    %c0_95 = arith.constant 0 : index
    %233 = vector.load %arg10[%232, %c0_94, %c0_95] : memref<4x8x32xf32, #tpu.memory_space<vmem>>, vector<1x8x32xf32>
    %234 = vector.shape_cast %233 : vector<1x8x32xf32> to vector<8x32xf32>
    %235 = vector.shape_cast %231 : vector<8x32xf32> to vector<1x8x32xf32>
    tpu.vector_store %arg10[%232, %c0_94, %c0_95], %235 {strides = array<i32>} : memref<4x8x32xf32, #tpu.memory_space<vmem>>, vector<1x8x32xf32>,
    %cst_96 = arith.constant 1.000000e+00 : f32
    %236 = vector.broadcast %cst_96 : f32 to vector<8x32xf32>
    %237 = arith.cmpf oge, %227, %236 : vector<8x32xf32>
    %cst_97 = arith.constant 0.000000e+00 : f32
    %238 = vector.broadcast %cst_97 : f32 to vector<8x32xf32>
    %239 = arith.select %237, %238, %227 : vector<8x32xi1>, vector<8x32xf32>
    %240 = arith.index_cast %c2_i32 : i32 to index
    %c0_98 = arith.constant 0 : index
    %c0_99 = arith.constant 0 : index
    %241 = vector.load %arg11[%240, %c0_98, %c0_99] : memref<4x8x32xf32, #tpu.memory_space<vmem>>, vector<1x8x32xf32>
    %242 = vector.shape_cast %241 : vector<1x8x32xf32> to vector<8x32xf32>
    %243 = arith.subf %242, %201 : vector<8x32xf32>
    %cst_100 = arith.constant 5.000000e-01 : f32
    %244 = vector.broadcast %cst_100 : f32 to vector<8x32xf32>
    %245 = arith.mulf %243, %244 : vector<8x32xf32>
    %246 = arith.addf %201, %245 : vector<8x32xf32>
    %cst_101 = arith.constant 1.000000e+00 : f32
    %247 = vector.broadcast %cst_101 : f32 to vector<8x32xf32>
    %248 = arith.cmpf oge, %246, %247 : vector<8x32xf32>
    %249 = arith.extui %248 : vector<8x32xi1> to vector<8x32xi32>
    %250 = arith.sitofp %249 : vector<8x32xi32> to vector<8x32xf32>
    %251 = arith.index_cast %c2_i32 : i32 to index
    %c0_102 = arith.constant 0 : index
    %c0_103 = arith.constant 0 : index
    %252 = vector.load %arg11[%251, %c0_102, %c0_103] : memref<4x8x32xf32, #tpu.memory_space<vmem>>, vector<1x8x32xf32>
    %253 = vector.shape_cast %252 : vector<1x8x32xf32> to vector<8x32xf32>
    %254 = vector.shape_cast %250 : vector<8x32xf32> to vector<1x8x32xf32>
    tpu.vector_store %arg11[%251, %c0_102, %c0_103], %254 {strides = array<i32>} : memref<4x8x32xf32, #tpu.memory_space<vmem>>, vector<1x8x32xf32>,
    %cst_104 = arith.constant 1.000000e+00 : f32
    %255 = vector.broadcast %cst_104 : f32 to vector<8x32xf32>
    %256 = arith.cmpf oge, %246, %255 : vector<8x32xf32>
    %cst_105 = arith.constant 0.000000e+00 : f32
    %257 = vector.broadcast %cst_105 : f32 to vector<8x32xf32>
    %258 = arith.select %256, %257, %246 : vector<8x32xi1>, vector<8x32xf32>
    %259 = arith.index_cast %c2_i32 : i32 to index
    %c0_106 = arith.constant 0 : index
    %c0_107 = arith.constant 0 : index
    %260 = vector.load %arg12[%259, %c0_106, %c0_107] : memref<4x8x32xf32, #tpu.memory_space<vmem>>, vector<1x8x32xf32>
    %261 = vector.shape_cast %260 : vector<1x8x32xf32> to vector<8x32xf32>
    %262 = arith.subf %261, %220 : vector<8x32xf32>
    %cst_108 = arith.constant 5.000000e-01 : f32
    %263 = vector.broadcast %cst_108 : f32 to vector<8x32xf32>
    %264 = arith.mulf %262, %263 : vector<8x32xf32>
    %265 = arith.addf %220, %264 : vector<8x32xf32>
    %cst_109 = arith.constant 1.000000e+00 : f32
    %266 = vector.broadcast %cst_109 : f32 to vector<8x32xf32>
    %267 = arith.cmpf oge, %265, %266 : vector<8x32xf32>
    %268 = arith.extui %267 : vector<8x32xi1> to vector<8x32xi32>
    %269 = arith.sitofp %268 : vector<8x32xi32> to vector<8x32xf32>
    %270 = arith.index_cast %c2_i32 : i32 to index
    %c0_110 = arith.constant 0 : index
    %c0_111 = arith.constant 0 : index
    %271 = vector.load %arg12[%270, %c0_110, %c0_111] : memref<4x8x32xf32, #tpu.memory_space<vmem>>, vector<1x8x32xf32>
    %272 = vector.shape_cast %271 : vector<1x8x32xf32> to vector<8x32xf32>
    %273 = vector.shape_cast %269 : vector<8x32xf32> to vector<1x8x32xf32>
    tpu.vector_store %arg12[%270, %c0_110, %c0_111], %273 {strides = array<i32>} : memref<4x8x32xf32, #tpu.memory_space<vmem>>, vector<1x8x32xf32>,
    %cst_112 = arith.constant 1.000000e+00 : f32
    %274 = vector.broadcast %cst_112 : f32 to vector<8x32xf32>
    %275 = arith.cmpf oge, %265, %274 : vector<8x32xf32>
    %cst_113 = arith.constant 0.000000e+00 : f32
    %276 = vector.broadcast %cst_113 : f32 to vector<8x32xf32>
    %277 = arith.select %275, %276, %265 : vector<8x32xi1>, vector<8x32xf32>
    %c3_i32 = arith.constant 3 : i32
    %278 = arith.index_cast %c3_i32 : i32 to index
    %c0_114 = arith.constant 0 : index
    %c0_115 = arith.constant 0 : index
    %279 = vector.load %arg10[%278, %c0_114, %c0_115] : memref<4x8x32xf32, #tpu.memory_space<vmem>>, vector<1x8x32xf32>
    %280 = vector.shape_cast %279 : vector<1x8x32xf32> to vector<8x32xf32>
    %281 = arith.subf %280, %239 : vector<8x32xf32>
    %cst_116 = arith.constant 5.000000e-01 : f32
    %282 = vector.broadcast %cst_116 : f32 to vector<8x32xf32>
    %283 = arith.mulf %281, %282 : vector<8x32xf32>
    %284 = arith.addf %239, %283 : vector<8x32xf32>
    %cst_117 = arith.constant 1.000000e+00 : f32
    %285 = vector.broadcast %cst_117 : f32 to vector<8x32xf32>
    %286 = arith.cmpf oge, %284, %285 : vector<8x32xf32>
    %287 = arith.extui %286 : vector<8x32xi1> to vector<8x32xi32>
    %288 = arith.sitofp %287 : vector<8x32xi32> to vector<8x32xf32>
    %289 = arith.index_cast %c3_i32 : i32 to index
    %c0_118 = arith.constant 0 : index
    %c0_119 = arith.constant 0 : index
    %290 = vector.load %arg10[%289, %c0_118, %c0_119] : memref<4x8x32xf32, #tpu.memory_space<vmem>>, vector<1x8x32xf32>
    %291 = vector.shape_cast %290 : vector<1x8x32xf32> to vector<8x32xf32>
    %292 = vector.shape_cast %288 : vector<8x32xf32> to vector<1x8x32xf32>
    tpu.vector_store %arg10[%289, %c0_118, %c0_119], %292 {strides = array<i32>} : memref<4x8x32xf32, #tpu.memory_space<vmem>>, vector<1x8x32xf32>,
    %cst_120 = arith.constant 1.000000e+00 : f32
    %293 = vector.broadcast %cst_120 : f32 to vector<8x32xf32>
    %294 = arith.cmpf oge, %284, %293 : vector<8x32xf32>
    %cst_121 = arith.constant 0.000000e+00 : f32
    %295 = vector.broadcast %cst_121 : f32 to vector<8x32xf32>
    %296 = arith.select %294, %295, %284 : vector<8x32xi1>, vector<8x32xf32>
    %297 = arith.index_cast %c3_i32 : i32 to index
    %c0_122 = arith.constant 0 : index
    %c0_123 = arith.constant 0 : index
    %298 = vector.load %arg11[%297, %c0_122, %c0_123] : memref<4x8x32xf32, #tpu.memory_space<vmem>>, vector<1x8x32xf32>
    %299 = vector.shape_cast %298 : vector<1x8x32xf32> to vector<8x32xf32>
    %300 = arith.subf %299, %258 : vector<8x32xf32>
    %cst_124 = arith.constant 5.000000e-01 : f32
    %301 = vector.broadcast %cst_124 : f32 to vector<8x32xf32>
    %302 = arith.mulf %300, %301 : vector<8x32xf32>
    %303 = arith.addf %258, %302 : vector<8x32xf32>
    %cst_125 = arith.constant 1.000000e+00 : f32
    %304 = vector.broadcast %cst_125 : f32 to vector<8x32xf32>
    %305 = arith.cmpf oge, %303, %304 : vector<8x32xf32>
    %306 = arith.extui %305 : vector<8x32xi1> to vector<8x32xi32>
    %307 = arith.sitofp %306 : vector<8x32xi32> to vector<8x32xf32>
    %308 = arith.index_cast %c3_i32 : i32 to index
    %c0_126 = arith.constant 0 : index
    %c0_127 = arith.constant 0 : index
    %309 = vector.load %arg11[%308, %c0_126, %c0_127] : memref<4x8x32xf32, #tpu.memory_space<vmem>>, vector<1x8x32xf32>
    %310 = vector.shape_cast %309 : vector<1x8x32xf32> to vector<8x32xf32>
    %311 = vector.shape_cast %307 : vector<8x32xf32> to vector<1x8x32xf32>
    tpu.vector_store %arg11[%308, %c0_126, %c0_127], %311 {strides = array<i32>} : memref<4x8x32xf32, #tpu.memory_space<vmem>>, vector<1x8x32xf32>,
    %cst_128 = arith.constant 1.000000e+00 : f32
    %312 = vector.broadcast %cst_128 : f32 to vector<8x32xf32>
    %313 = arith.cmpf oge, %303, %312 : vector<8x32xf32>
    %cst_129 = arith.constant 0.000000e+00 : f32
    %314 = vector.broadcast %cst_129 : f32 to vector<8x32xf32>
    %315 = arith.select %313, %314, %303 : vector<8x32xi1>, vector<8x32xf32>
    %316 = arith.index_cast %c3_i32 : i32 to index
    %c0_130 = arith.constant 0 : index
    %c0_131 = arith.constant 0 : index
    %317 = vector.load %arg12[%316, %c0_130, %c0_131] : memref<4x8x32xf32, #tpu.memory_space<vmem>>, vector<1x8x32xf32>
    %318 = vector.shape_cast %317 : vector<1x8x32xf32> to vector<8x32xf32>
    %319 = arith.subf %318, %277 : vector<8x32xf32>
    %cst_132 = arith.constant 5.000000e-01 : f32
    %320 = vector.broadcast %cst_132 : f32 to vector<8x32xf32>
    %321 = arith.mulf %319, %320 : vector<8x32xf32>
    %322 = arith.addf %277, %321 : vector<8x32xf32>
    %cst_133 = arith.constant 1.000000e+00 : f32
    %323 = vector.broadcast %cst_133 : f32 to vector<8x32xf32>
    %324 = arith.cmpf oge, %322, %323 : vector<8x32xf32>
    %325 = arith.extui %324 : vector<8x32xi1> to vector<8x32xi32>
    %326 = arith.sitofp %325 : vector<8x32xi32> to vector<8x32xf32>
    %327 = arith.index_cast %c3_i32 : i32 to index
    %c0_134 = arith.constant 0 : index
    %c0_135 = arith.constant 0 : index
    %328 = vector.load %arg12[%327, %c0_134, %c0_135] : memref<4x8x32xf32, #tpu.memory_space<vmem>>, vector<1x8x32xf32>
    %329 = vector.shape_cast %328 : vector<1x8x32xf32> to vector<8x32xf32>
    %330 = vector.shape_cast %326 : vector<8x32xf32> to vector<1x8x32xf32>
    tpu.vector_store %arg12[%327, %c0_134, %c0_135], %330 {strides = array<i32>} : memref<4x8x32xf32, #tpu.memory_space<vmem>>, vector<1x8x32xf32>,
    %cst_136 = arith.constant 1.000000e+00 : f32
    %331 = vector.broadcast %cst_136 : f32 to vector<8x32xf32>
    %332 = arith.cmpf oge, %322, %331 : vector<8x32xf32>
    %cst_137 = arith.constant 0.000000e+00 : f32
    %333 = vector.broadcast %cst_137 : f32 to vector<8x32xf32>
    %334 = arith.select %332, %333, %322 : vector<8x32xi1>, vector<8x32xf32>
    %c4_i32 = arith.constant 4 : i32
    %c0_138 = arith.constant 0 : index
    %c0_139 = arith.constant 0 : index
    %c0_140 = arith.constant 0 : index
    %335 = vector.load %arg10[%c0_138, %c0_139, %c0_140] : memref<4x8x32xf32, #tpu.memory_space<vmem>>, vector<4x8x32xf32>
    %336 = arith.truncf %335 : vector<4x8x32xf32> to vector<4x8x32xbf16>
    %c0_141 = arith.constant 0 : index
    %c0_142 = arith.constant 0 : index
    %c0_143 = arith.constant 0 : index
    %337 = vector.load %arg11[%c0_141, %c0_142, %c0_143] : memref<4x8x32xf32, #tpu.memory_space<vmem>>, vector<4x8x32xf32>
    %338 = arith.truncf %337 : vector<4x8x32xf32> to vector<4x8x32xbf16>
    %c0_144 = arith.constant 0 : index
    %c0_145 = arith.constant 0 : index
    %c0_146 = arith.constant 0 : index
    %339 = vector.load %arg12[%c0_144, %c0_145, %c0_146] : memref<4x8x32xf32, #tpu.memory_space<vmem>>, vector<4x8x32xf32>
    %340 = arith.truncf %339 : vector<4x8x32xf32> to vector<4x8x32xbf16>
    "tpu.trace_start"() <{level = 10 : i32, message = "tld,tle->tde"}> : () -> ()
    %cst_147 = arith.constant dense<0.000000e+00> : vector<4x32x32xf32>
    %341 = tpu.matmul %338, %340, %cst_147 {dimension_numbers = #tpu.dot_dimension_numbers<[1], [1], [2], [2], [0, 0, 0, 2, 1, 2], [0], [0]>} : vector<4x8x32xbf16>, vector<4x8x32xbf16>, vector<4x32x32xf32> -> vector<4x32x32xf32>
    "tpu.trace_stop"() : () -> ()
    %342 = vector.shape_cast %6 : vector<32x32xf32> to vector<1x32x32xf32>
    %343 = vector.broadcast %342 : vector<1x32x32xf32> to vector<4x32x32xf32>
    %344 = arith.mulf %341, %343 : vector<4x32x32xf32>
    %345 = arith.truncf %344 : vector<4x32x32xf32> to vector<4x32x32xbf16>
    "tpu.trace_start"() <{level = 10 : i32, message = "tld,tde->tle"}> : () -> ()
    %cst_148 = arith.constant dense<0.000000e+00> : vector<4x8x32xf32>
    %346 = tpu.matmul %336, %345, %cst_148 {dimension_numbers = #tpu.dot_dimension_numbers<[2], [1], [1], [2], [0, 0, 0, 1, 1, 2], [0], [0]>} : vector<4x8x32xbf16>, vector<4x32x32xbf16>, vector<4x8x32xf32> -> vector<4x8x32xf32>
    "tpu.trace_stop"() : () -> ()
    %cst_149 = arith.constant 2.500000e-01 : f32
    %347 = vector.broadcast %cst_149 : f32 to vector<4x8x32xf32>
    %348 = arith.mulf %346, %347 : vector<4x8x32xf32>
    %c0_150 = arith.constant 0 : index
    %c0_151 = arith.constant 0 : index
    %c0_152 = arith.constant 0 : index
    %349 = vector.load %arg13[%c0_150, %c0_151, %c0_152] : memref<4x8x32xf32, #tpu.memory_space<vmem>>, vector<4x8x32xf32>
    tpu.vector_store %arg13[%c0_150, %c0_151, %c0_152], %348 {strides = array<i32>} : memref<4x8x32xf32, #tpu.memory_space<vmem>>, vector<4x8x32xf32>,
    %c0_i32_153 = arith.constant 0 : i32
    %350 = arith.index_cast %c0_i32_153 : i32 to index
    %c0_154 = arith.constant 0 : index
    %c0_155 = arith.constant 0 : index
    %351 = vector.load %arg13[%350, %c0_154, %c0_155] : memref<4x8x32xf32, #tpu.memory_space<vmem>>, vector<1x8x32xf32>
    %352 = vector.shape_cast %351 : vector<1x8x32xf32> to vector<8x32xf32>
    %353 = arith.subf %352, %106 : vector<8x32xf32>
    %cst_156 = arith.constant 5.000000e-01 : f32
    %354 = vector.broadcast %cst_156 : f32 to vector<8x32xf32>
    %355 = arith.mulf %353, %354 : vector<8x32xf32>
    %356 = arith.addf %106, %355 : vector<8x32xf32>
    %cst_157 = arith.constant 5.000000e-01 : f32
    %357 = vector.broadcast %cst_157 : f32 to vector<8x32xf32>
    %358 = arith.cmpf oge, %356, %357 : vector<8x32xf32>
    %359 = arith.extui %358 : vector<8x32xi1> to vector<8x32xi32>
    %360 = arith.sitofp %359 : vector<8x32xi32> to vector<8x32xf32>
    %361 = arith.index_cast %c0_i32_153 : i32 to index
    %c0_158 = arith.constant 0 : index
    %c0_159 = arith.constant 0 : index
    %362 = vector.load %arg13[%361, %c0_158, %c0_159] : memref<4x8x32xf32, #tpu.memory_space<vmem>>, vector<1x8x32xf32>
    %363 = vector.shape_cast %362 : vector<1x8x32xf32> to vector<8x32xf32>
    %364 = vector.shape_cast %360 : vector<8x32xf32> to vector<1x8x32xf32>
    tpu.vector_store %arg13[%361, %c0_158, %c0_159], %364 {strides = array<i32>} : memref<4x8x32xf32, #tpu.memory_space<vmem>>, vector<1x8x32xf32>,
    %cst_160 = arith.constant 5.000000e-01 : f32
    %365 = vector.broadcast %cst_160 : f32 to vector<8x32xf32>
    %366 = arith.cmpf oge, %356, %365 : vector<8x32xf32>
    %cst_161 = arith.constant 0.000000e+00 : f32
    %367 = vector.broadcast %cst_161 : f32 to vector<8x32xf32>
    %368 = arith.select %366, %367, %356 : vector<8x32xi1>, vector<8x32xf32>
    %c1_i32_162 = arith.constant 1 : i32
    %369 = arith.index_cast %c1_i32_162 : i32 to index
    %c0_163 = arith.constant 0 : index
    %c0_164 = arith.constant 0 : index
    %370 = vector.load %arg13[%369, %c0_163, %c0_164] : memref<4x8x32xf32, #tpu.memory_space<vmem>>, vector<1x8x32xf32>
    %371 = vector.shape_cast %370 : vector<1x8x32xf32> to vector<8x32xf32>
    %372 = arith.subf %371, %368 : vector<8x32xf32>
    %cst_165 = arith.constant 5.000000e-01 : f32
    %373 = vector.broadcast %cst_165 : f32 to vector<8x32xf32>
    %374 = arith.mulf %372, %373 : vector<8x32xf32>
    %375 = arith.addf %368, %374 : vector<8x32xf32>
    %cst_166 = arith.constant 5.000000e-01 : f32
    %376 = vector.broadcast %cst_166 : f32 to vector<8x32xf32>
    %377 = arith.cmpf oge, %375, %376 : vector<8x32xf32>
    %378 = arith.extui %377 : vector<8x32xi1> to vector<8x32xi32>
    %379 = arith.sitofp %378 : vector<8x32xi32> to vector<8x32xf32>
    %380 = arith.index_cast %c1_i32_162 : i32 to index
    %c0_167 = arith.constant 0 : index
    %c0_168 = arith.constant 0 : index
    %381 = vector.load %arg13[%380, %c0_167, %c0_168] : memref<4x8x32xf32, #tpu.memory_space<vmem>>, vector<1x8x32xf32>
    %382 = vector.shape_cast %381 : vector<1x8x32xf32> to vector<8x32xf32>
    %383 = vector.shape_cast %379 : vector<8x32xf32> to vector<1x8x32xf32>
    tpu.vector_store %arg13[%380, %c0_167, %c0_168], %383 {strides = array<i32>} : memref<4x8x32xf32, #tpu.memory_space<vmem>>, vector<1x8x32xf32>,
    %cst_169 = arith.constant 5.000000e-01 : f32
    %384 = vector.broadcast %cst_169 : f32 to vector<8x32xf32>
    %385 = arith.cmpf oge, %375, %384 : vector<8x32xf32>
    %cst_170 = arith.constant 0.000000e+00 : f32
    %386 = vector.broadcast %cst_170 : f32 to vector<8x32xf32>
    %387 = arith.select %385, %386, %375 : vector<8x32xi1>, vector<8x32xf32>
    %c2_i32_171 = arith.constant 2 : i32
    %388 = arith.index_cast %c2_i32_171 : i32 to index
    %c0_172 = arith.constant 0 : index
    %c0_173 = arith.constant 0 : index
    %389 = vector.load %arg13[%388, %c0_172, %c0_173] : memref<4x8x32xf32, #tpu.memory_space<vmem>>, vector<1x8x32xf32>
    %390 = vector.shape_cast %389 : vector<1x8x32xf32> to vector<8x32xf32>
    %391 = arith.subf %390, %387 : vector<8x32xf32>
    %cst_174 = arith.constant 5.000000e-01 : f32
    %392 = vector.broadcast %cst_174 : f32 to vector<8x32xf32>
    %393 = arith.mulf %391, %392 : vector<8x32xf32>
    %394 = arith.addf %387, %393 : vector<8x32xf32>
    %cst_175 = arith.constant 5.000000e-01 : f32
    %395 = vector.broadcast %cst_175 : f32 to vector<8x32xf32>
    %396 = arith.cmpf oge, %394, %395 : vector<8x32xf32>
    %397 = arith.extui %396 : vector<8x32xi1> to vector<8x32xi32>
    %398 = arith.sitofp %397 : vector<8x32xi32> to vector<8x32xf32>
    %399 = arith.index_cast %c2_i32_171 : i32 to index
    %c0_176 = arith.constant 0 : index
    %c0_177 = arith.constant 0 : index
    %400 = vector.load %arg13[%399, %c0_176, %c0_177] : memref<4x8x32xf32, #tpu.memory_space<vmem>>, vector<1x8x32xf32>
    %401 = vector.shape_cast %400 : vector<1x8x32xf32> to vector<8x32xf32>
    %402 = vector.shape_cast %398 : vector<8x32xf32> to vector<1x8x32xf32>
    tpu.vector_store %arg13[%399, %c0_176, %c0_177], %402 {strides = array<i32>} : memref<4x8x32xf32, #tpu.memory_space<vmem>>, vector<1x8x32xf32>,
    %cst_178 = arith.constant 5.000000e-01 : f32
    %403 = vector.broadcast %cst_178 : f32 to vector<8x32xf32>
    %404 = arith.cmpf oge, %394, %403 : vector<8x32xf32>
    %cst_179 = arith.constant 0.000000e+00 : f32
    %405 = vector.broadcast %cst_179 : f32 to vector<8x32xf32>
    %406 = arith.select %404, %405, %394 : vector<8x32xi1>, vector<8x32xf32>
    %c3_i32_180 = arith.constant 3 : i32
    %407 = arith.index_cast %c3_i32_180 : i32 to index
    %c0_181 = arith.constant 0 : index
    %c0_182 = arith.constant 0 : index
    %408 = vector.load %arg13[%407, %c0_181, %c0_182] : memref<4x8x32xf32, #tpu.memory_space<vmem>>, vector<1x8x32xf32>
    %409 = vector.shape_cast %408 : vector<1x8x32xf32> to vector<8x32xf32>
    %410 = arith.subf %409, %406 : vector<8x32xf32>
    %cst_183 = arith.constant 5.000000e-01 : f32
    %411 = vector.broadcast %cst_183 : f32 to vector<8x32xf32>
    %412 = arith.mulf %410, %411 : vector<8x32xf32>
    %413 = arith.addf %406, %412 : vector<8x32xf32>
    %cst_184 = arith.constant 5.000000e-01 : f32
    %414 = vector.broadcast %cst_184 : f32 to vector<8x32xf32>
    %415 = arith.cmpf oge, %413, %414 : vector<8x32xf32>
    %416 = arith.extui %415 : vector<8x32xi1> to vector<8x32xi32>
    %417 = arith.sitofp %416 : vector<8x32xi32> to vector<8x32xf32>
    %418 = arith.index_cast %c3_i32_180 : i32 to index
    %c0_185 = arith.constant 0 : index
    %c0_186 = arith.constant 0 : index
    %419 = vector.load %arg13[%418, %c0_185, %c0_186] : memref<4x8x32xf32, #tpu.memory_space<vmem>>, vector<1x8x32xf32>
    %420 = vector.shape_cast %419 : vector<1x8x32xf32> to vector<8x32xf32>
    %421 = vector.shape_cast %417 : vector<8x32xf32> to vector<1x8x32xf32>
    tpu.vector_store %arg13[%418, %c0_185, %c0_186], %421 {strides = array<i32>} : memref<4x8x32xf32, #tpu.memory_space<vmem>>, vector<1x8x32xf32>,
    %cst_187 = arith.constant 5.000000e-01 : f32
    %422 = vector.broadcast %cst_187 : f32 to vector<8x32xf32>
    %423 = arith.cmpf oge, %413, %422 : vector<8x32xf32>
    %cst_188 = arith.constant 0.000000e+00 : f32
    %424 = vector.broadcast %cst_188 : f32 to vector<8x32xf32>
    %425 = arith.select %423, %424, %413 : vector<8x32xi1>, vector<8x32xf32>
    %c4_i32_189 = arith.constant 4 : i32
    %c0_190 = arith.constant 0 : index
    %c0_191 = arith.constant 0 : index
    %c0_192 = arith.constant 0 : index
    %426 = vector.load %arg13[%c0_190, %c0_191, %c0_192] : memref<4x8x32xf32, #tpu.memory_space<vmem>>, vector<4x8x32xf32>
    %427 = vector.shape_cast %426 : vector<4x8x32xf32> to vector<32x32xf32>
    %cst_193 = arith.constant dense<0.000000e+00> : vector<32x32xf32>
    %428 = tpu.matmul %427, %2, %cst_193 {dimension_numbers = #tpu.dot_dimension_numbers<[1], [0], [0], [1], [0, 0, 1, 1], [], []>} : vector<32x32xf32>, vector<32x32xf32>, vector<32x32xf32> -> vector<32x32xf32>
    %429 = vector.broadcast %3 : vector<1x32xf32> to vector<32x32xf32>
    %430 = arith.addf %428, %429 : vector<32x32xf32>
    %cst_194 = arith.constant dense<0.000000e+00> : vector<32xf32>
    %431 = vector.multi_reduction <add>, %430, %cst_194 [1] : vector<32x32xf32> to vector<32xf32>
    %432 = vector.shape_cast %431 : vector<32xf32> to vector<32x1xf32>
    %cst_195 = arith.constant 3.200000e+01 : f32
    %433 = vector.broadcast %cst_195 : f32 to vector<32x1xf32>
    %434 = arith.divf %432, %433 : vector<32x1xf32>
    %435 = arith.mulf %430, %430 : vector<32x32xf32>
    %cst_196 = arith.constant dense<0.000000e+00> : vector<32xf32>
    %436 = vector.multi_reduction <add>, %435, %cst_196 [1] : vector<32x32xf32> to vector<32xf32>
    %437 = vector.shape_cast %436 : vector<32xf32> to vector<32x1xf32>
    %cst_197 = arith.constant 3.200000e+01 : f32
    %438 = vector.broadcast %cst_197 : f32 to vector<32x1xf32>
    %439 = arith.divf %437, %438 : vector<32x1xf32>
    %440 = arith.mulf %434, %434 : vector<32x1xf32>
    %441 = arith.subf %439, %440 : vector<32x1xf32>
    %442 = vector.broadcast %434 : vector<32x1xf32> to vector<32x32xf32>
    %443 = arith.subf %430, %442 : vector<32x32xf32>
    %cst_198 = arith.constant 9.99999974E-6 : f32
    %444 = vector.broadcast %cst_198 : f32 to vector<32x1xf32>
    %445 = arith.addf %441, %444 : vector<32x1xf32>
    %446 = math.rsqrt %445 : vector<32x1xf32>
    %447 = vector.broadcast %446 : vector<32x1xf32> to vector<32x32xf32>
    %448 = arith.mulf %443, %447 : vector<32x32xf32>
    %449 = vector.extract_strided_slice %4 {offsets = [3, 0], sizes = [1, 32], strides = [1, 1]} : vector<4x32xf32> to vector<1x32xf32>
    %450 = vector.shape_cast %449 : vector<1x32xf32> to vector<32xf32>
    %451 = vector.shape_cast %450 : vector<32xf32> to vector<1x32xf32>
    %452 = vector.broadcast %451 : vector<1x32xf32> to vector<32x32xf32>
    %453 = arith.mulf %448, %452 : vector<32x32xf32>
    %454 = vector.extract_strided_slice %5 {offsets = [3, 0], sizes = [1, 32], strides = [1, 1]} : vector<4x32xf32> to vector<1x32xf32>
    %455 = vector.shape_cast %454 : vector<1x32xf32> to vector<32xf32>
    %456 = vector.shape_cast %455 : vector<32xf32> to vector<1x32xf32>
    %457 = vector.broadcast %456 : vector<1x32xf32> to vector<32x32xf32>
    %458 = arith.addf %453, %457 : vector<32x32xf32>
    %459 = vector.shape_cast %458 : vector<32x32xf32> to vector<4x8x32xf32>
    %c0_199 = arith.constant 0 : index
    %c0_200 = arith.constant 0 : index
    %c0_201 = arith.constant 0 : index
    %460 = vector.load %arg13[%c0_199, %c0_200, %c0_201] : memref<4x8x32xf32, #tpu.memory_space<vmem>>, vector<4x8x32xf32>
    tpu.vector_store %arg13[%c0_199, %c0_200, %c0_201], %459 {strides = array<i32>} : memref<4x8x32xf32, #tpu.memory_space<vmem>>, vector<4x8x32xf32>,
    %c0_i32_202 = arith.constant 0 : i32
    %461 = arith.index_cast %c0_i32_202 : i32 to index
    %c0_203 = arith.constant 0 : index
    %c0_204 = arith.constant 0 : index
    %462 = vector.load %arg13[%461, %c0_203, %c0_204] : memref<4x8x32xf32, #tpu.memory_space<vmem>>, vector<1x8x32xf32>
    %463 = vector.shape_cast %462 : vector<1x8x32xf32> to vector<8x32xf32>
    %464 = arith.subf %463, %106 : vector<8x32xf32>
    %cst_205 = arith.constant 5.000000e-01 : f32
    %465 = vector.broadcast %cst_205 : f32 to vector<8x32xf32>
    %466 = arith.mulf %464, %465 : vector<8x32xf32>
    %467 = arith.addf %106, %466 : vector<8x32xf32>
    %cst_206 = arith.constant 1.000000e+00 : f32
    %468 = vector.broadcast %cst_206 : f32 to vector<8x32xf32>
    %469 = arith.cmpf oge, %467, %468 : vector<8x32xf32>
    %470 = arith.extui %469 : vector<8x32xi1> to vector<8x32xi32>
    %471 = arith.sitofp %470 : vector<8x32xi32> to vector<8x32xf32>
    %c0_207 = arith.constant 0 : index
    %472 = arith.index_cast %c0_i32_202 : i32 to index
    %c0_208 = arith.constant 0 : index
    %c0_209 = arith.constant 0 : index
    %473 = vector.load %arg9[%c0_207, %472, %c0_208, %c0_209] : memref<1x4x8x32xf32, #tpu.memory_space<vmem>>, vector<1x1x8x32xf32>
    %474 = vector.shape_cast %473 : vector<1x1x8x32xf32> to vector<8x32xf32>
    %475 = vector.shape_cast %471 : vector<8x32xf32> to vector<1x1x8x32xf32>
    tpu.vector_store %arg9[%c0_207, %472, %c0_208, %c0_209], %475 {strides = array<i32>} : memref<1x4x8x32xf32, #tpu.memory_space<vmem>>, vector<1x1x8x32xf32>,
    %cst_210 = arith.constant 1.000000e+00 : f32
    %476 = vector.broadcast %cst_210 : f32 to vector<8x32xf32>
    %477 = arith.cmpf oge, %467, %476 : vector<8x32xf32>
    %cst_211 = arith.constant 0.000000e+00 : f32
    %478 = vector.broadcast %cst_211 : f32 to vector<8x32xf32>
    %479 = arith.select %477, %478, %467 : vector<8x32xi1>, vector<8x32xf32>
    %c1_i32_212 = arith.constant 1 : i32
    %480 = arith.index_cast %c1_i32_212 : i32 to index
    %c0_213 = arith.constant 0 : index
    %c0_214 = arith.constant 0 : index
    %481 = vector.load %arg13[%480, %c0_213, %c0_214] : memref<4x8x32xf32, #tpu.memory_space<vmem>>, vector<1x8x32xf32>
    %482 = vector.shape_cast %481 : vector<1x8x32xf32> to vector<8x32xf32>
    %483 = arith.subf %482, %479 : vector<8x32xf32>
    %cst_215 = arith.constant 5.000000e-01 : f32
    %484 = vector.broadcast %cst_215 : f32 to vector<8x32xf32>
    %485 = arith.mulf %483, %484 : vector<8x32xf32>
    %486 = arith.addf %479, %485 : vector<8x32xf32>
    %cst_216 = arith.constant 1.000000e+00 : f32
    %487 = vector.broadcast %cst_216 : f32 to vector<8x32xf32>
    %488 = arith.cmpf oge, %486, %487 : vector<8x32xf32>
    %489 = arith.extui %488 : vector<8x32xi1> to vector<8x32xi32>
    %490 = arith.sitofp %489 : vector<8x32xi32> to vector<8x32xf32>
    %c0_217 = arith.constant 0 : index
    %491 = arith.index_cast %c1_i32_212 : i32 to index
    %c0_218 = arith.constant 0 : index
    %c0_219 = arith.constant 0 : index
    %492 = vector.load %arg9[%c0_217, %491, %c0_218, %c0_219] : memref<1x4x8x32xf32, #tpu.memory_space<vmem>>, vector<1x1x8x32xf32>
    %493 = vector.shape_cast %492 : vector<1x1x8x32xf32> to vector<8x32xf32>
    %494 = vector.shape_cast %490 : vector<8x32xf32> to vector<1x1x8x32xf32>
    tpu.vector_store %arg9[%c0_217, %491, %c0_218, %c0_219], %494 {strides = array<i32>} : memref<1x4x8x32xf32, #tpu.memory_space<vmem>>, vector<1x1x8x32xf32>,
    %cst_220 = arith.constant 1.000000e+00 : f32
    %495 = vector.broadcast %cst_220 : f32 to vector<8x32xf32>
    %496 = arith.cmpf oge, %486, %495 : vector<8x32xf32>
    %cst_221 = arith.constant 0.000000e+00 : f32
    %497 = vector.broadcast %cst_221 : f32 to vector<8x32xf32>
    %498 = arith.select %496, %497, %486 : vector<8x32xi1>, vector<8x32xf32>
    %c2_i32_222 = arith.constant 2 : i32
    %499 = arith.index_cast %c2_i32_222 : i32 to index
    %c0_223 = arith.constant 0 : index
    %c0_224 = arith.constant 0 : index
    %500 = vector.load %arg13[%499, %c0_223, %c0_224] : memref<4x8x32xf32, #tpu.memory_space<vmem>>, vector<1x8x32xf32>
    %501 = vector.shape_cast %500 : vector<1x8x32xf32> to vector<8x32xf32>
    %502 = arith.subf %501, %498 : vector<8x32xf32>
    %cst_225 = arith.constant 5.000000e-01 : f32
    %503 = vector.broadcast %cst_225 : f32 to vector<8x32xf32>
    %504 = arith.mulf %502, %503 : vector<8x32xf32>
    %505 = arith.addf %498, %504 : vector<8x32xf32>
    %cst_226 = arith.constant 1.000000e+00 : f32
    %506 = vector.broadcast %cst_226 : f32 to vector<8x32xf32>
    %507 = arith.cmpf oge, %505, %506 : vector<8x32xf32>
    %508 = arith.extui %507 : vector<8x32xi1> to vector<8x32xi32>
    %509 = arith.sitofp %508 : vector<8x32xi32> to vector<8x32xf32>
    %c0_227 = arith.constant 0 : index
    %510 = arith.index_cast %c2_i32_222 : i32 to index
    %c0_228 = arith.constant 0 : index
    %c0_229 = arith.constant 0 : index
    %511 = vector.load %arg9[%c0_227, %510, %c0_228, %c0_229] : memref<1x4x8x32xf32, #tpu.memory_space<vmem>>, vector<1x1x8x32xf32>
    %512 = vector.shape_cast %511 : vector<1x1x8x32xf32> to vector<8x32xf32>
    %513 = vector.shape_cast %509 : vector<8x32xf32> to vector<1x1x8x32xf32>
    tpu.vector_store %arg9[%c0_227, %510, %c0_228, %c0_229], %513 {strides = array<i32>} : memref<1x4x8x32xf32, #tpu.memory_space<vmem>>, vector<1x1x8x32xf32>,
    %cst_230 = arith.constant 1.000000e+00 : f32
    %514 = vector.broadcast %cst_230 : f32 to vector<8x32xf32>
    %515 = arith.cmpf oge, %505, %514 : vector<8x32xf32>
    %cst_231 = arith.constant 0.000000e+00 : f32
    %516 = vector.broadcast %cst_231 : f32 to vector<8x32xf32>
    %517 = arith.select %515, %516, %505 : vector<8x32xi1>, vector<8x32xf32>
    %c3_i32_232 = arith.constant 3 : i32
    %518 = arith.index_cast %c3_i32_232 : i32 to index
    %c0_233 = arith.constant 0 : index
    %c0_234 = arith.constant 0 : index
    %519 = vector.load %arg13[%518, %c0_233, %c0_234] : memref<4x8x32xf32, #tpu.memory_space<vmem>>, vector<1x8x32xf32>
    %520 = vector.shape_cast %519 : vector<1x8x32xf32> to vector<8x32xf32>
    %521 = arith.subf %520, %517 : vector<8x32xf32>
    %cst_235 = arith.constant 5.000000e-01 : f32
    %522 = vector.broadcast %cst_235 : f32 to vector<8x32xf32>
    %523 = arith.mulf %521, %522 : vector<8x32xf32>
    %524 = arith.addf %517, %523 : vector<8x32xf32>
    %cst_236 = arith.constant 1.000000e+00 : f32
    %525 = vector.broadcast %cst_236 : f32 to vector<8x32xf32>
    %526 = arith.cmpf oge, %524, %525 : vector<8x32xf32>
    %527 = arith.extui %526 : vector<8x32xi1> to vector<8x32xi32>
    %528 = arith.sitofp %527 : vector<8x32xi32> to vector<8x32xf32>
    %c0_237 = arith.constant 0 : index
    %529 = arith.index_cast %c3_i32_232 : i32 to index
    %c0_238 = arith.constant 0 : index
    %c0_239 = arith.constant 0 : index
    %530 = vector.load %arg9[%c0_237, %529, %c0_238, %c0_239] : memref<1x4x8x32xf32, #tpu.memory_space<vmem>>, vector<1x1x8x32xf32>
    %531 = vector.shape_cast %530 : vector<1x1x8x32xf32> to vector<8x32xf32>
    %532 = vector.shape_cast %528 : vector<8x32xf32> to vector<1x1x8x32xf32>
    tpu.vector_store %arg9[%c0_237, %529, %c0_238, %c0_239], %532 {strides = array<i32>} : memref<1x4x8x32xf32, #tpu.memory_space<vmem>>, vector<1x1x8x32xf32>,
    %cst_240 = arith.constant 1.000000e+00 : f32
    %533 = vector.broadcast %cst_240 : f32 to vector<8x32xf32>
    %534 = arith.cmpf oge, %524, %533 : vector<8x32xf32>
    %cst_241 = arith.constant 0.000000e+00 : f32
    %535 = vector.broadcast %cst_241 : f32 to vector<8x32xf32>
    %536 = arith.select %534, %535, %524 : vector<8x32xi1>, vector<8x32xf32>
    %c4_i32_242 = arith.constant 4 : i32
    return
  }
  func.func @transform_0(%arg0: i32) -> (i32, i32, i32, i32) {
    %c0_i32 = arith.constant 0 : i32
    %c0_i32_0 = arith.constant 0 : i32
    %c0_i32_1 = arith.constant 0 : i32
    %c0_i32_2 = arith.constant 0 : i32
    return %arg0, %c0_i32, %c0_i32_0, %c0_i32_1 : i32, i32, i32, i32
  }
  func.func @transform_1(%arg0: i32) -> (i32, i32) {
    %c0_i32 = arith.constant 0 : i32
    %c0_i32_0 = arith.constant 0 : i32
    %c0_i32_1 = arith.constant 0 : i32
    return %c0_i32, %c0_i32_0 : i32, i32
  }
  func.func @transform_2(%arg0: i32) -> (i32, i32) {
    %c0_i32 = arith.constant 0 : i32
    %c0_i32_0 = arith.constant 0 : i32
    %c0_i32_1 = arith.constant 0 : i32
    return %c0_i32, %c0_i32_0 : i32, i32
  }
  func.func @transform_3(%arg0: i32) -> (i32, i32) {
    %c0_i32 = arith.constant 0 : i32
    %c0_i32_0 = arith.constant 0 : i32
    %c0_i32_1 = arith.constant 0 : i32
    return %c0_i32, %c0_i32_0 : i32, i32
  }
  func.func @transform_4(%arg0: i32) -> (i32, i32) {
    %c0_i32 = arith.constant 0 : i32
    %c0_i32_0 = arith.constant 0 : i32
    %c0_i32_1 = arith.constant 0 : i32
    return %c0_i32, %c0_i32_0 : i32, i32
  }
  func.func @transform_5(%arg0: i32) -> (i32, i32) {
    %c0_i32 = arith.constant 0 : i32
    %c0_i32_0 = arith.constant 0 : i32
    %c0_i32_1 = arith.constant 0 : i32
    return %c0_i32, %c0_i32_0 : i32, i32
  }
  func.func @transform_6(%arg0: i32) -> (i32, i32) {
    %c0_i32 = arith.constant 0 : i32
    %c0_i32_0 = arith.constant 0 : i32
    %c0_i32_1 = arith.constant 0 : i32
    return %c0_i32, %c0_i32_0 : i32, i32
  }
  func.func @transform_7(%arg0: i32) -> (i32, i32) {
    %c0_i32 = arith.constant 0 : i32
    %c0_i32_0 = arith.constant 0 : i32
    %c0_i32_1 = arith.constant 0 : i32
    return %c0_i32, %c0_i32_0 : i32, i32
  }
  func.func @transform_8(%arg0: i32) -> (i32, i32, i32, i32) {
    %c0_i32 = arith.constant 0 : i32
    %c0_i32_0 = arith.constant 0 : i32
    %c0_i32_1 = arith.constant 0 : i32
    %c0_i32_2 = arith.constant 0 : i32
    return %arg0, %c0_i32, %c0_i32_0, %c0_i32_1 : i32, i32, i32, i32
  }
}

</mosaic_0001>

<llo_original>
// kernel: spiking_self_attention_forward.1
$region0: #{spiking_self_attention_forward.1}
  #allocation0 [shape = 'u32[]', space=smem, size = 0x4, offset = 0x4, fixed_abs, tag = 'smem constant byte address 0x4 - core index']
  #allocation1 [shape = 'u32[144,128]{1,0:T(1,128)}', space=vmem, size = 0x12000, scoped, tag = 'internal scratch']
  #allocation2 [shape = 'f32[4,8,32]{2,1,0:T(8,128)}', space=vmem, size = 0x4000, scoped, tag = 'scratch operand']
  #allocation3 [shape = 'f32[4,8,32]{2,1,0:T(8,128)}', space=vmem, size = 0x4000, scoped, tag = 'scratch operand']
  #allocation4 [shape = 'f32[4,8,32]{2,1,0:T(8,128)}', space=vmem, size = 0x4000, scoped, tag = 'scratch operand']
  #allocation5 [shape = 'f32[4,8,32]{2,1,0:T(8,128)}', space=vmem, size = 0x4000, scoped, tag = 'scratch operand']
  %s0 = inlined_call_operand.vmem [shape: f32[2,4,8,32], index: 0, kind: input, shape index: {}]
  %s1 = inlined_call_operand.vmem [shape: f32[32,96], index: 1, kind: input, shape index: {}]
  %s2 = inlined_call_operand.vmem [shape: f32[1,96], index: 2, kind: input, shape index: {}]
  %s3 = inlined_call_operand.vmem [shape: f32[32,32], index: 3, kind: input, shape index: {}]
  %s4 = inlined_call_operand.vmem [shape: f32[1,32], index: 4, kind: input, shape index: {}]
  %s5 = inlined_call_operand.vmem [shape: f32[4,32], index: 5, kind: input, shape index: {}]
  %s6 = inlined_call_operand.vmem [shape: f32[4,32], index: 6, kind: input, shape index: {}]
  %s7 = inlined_call_operand.vmem [shape: f32[32,32], index: 7, kind: input, shape index: {}]
  %s8 = inlined_call_operand.hbm [shape: f32[2,4,8,32], index: 8, kind: output, shape index: {}]
  %s9 = sld [smem:[#allocation0]]
  $region65: #{spiking_self_attention_forward.1} parent=0
    _
  %s11 = ssub.s32 1, %s9
  %s12 = scalar_select 0, %s11, %s9
  $region1: #{spiking_self_attention_forward.1} parent=0
    #allocation6 [shape = 'u8[32768]{0}', space=vmem, size = 0x8000, scoped, tag = 'output window, operand 0']
    #allocation7 [shape = 's32[2]{0}', space=sflag, size = 0x8, scoped, tag = 'scoped memory for spiking_self_attention_forward.1']
    %13 = vsyncpa [#allocation7], 0
    %s14 = scalar_lea.sflag [#allocation7], 1
    %15 = vsyncpa %s14, 0
    loop: start=0, step=1, limit=4
    $region2: #{spiking_self_attention_forward.1} parent=1 // loop_pre_header
      _
    $region3: #{spiking_self_attention_forward.1} parent=1 // loop_header
      %s17 = sphi 0, %s21
      %p18 = scmp.ge.s32.totalorder %s17, 4
      %s27 = sphi 0, %s29
      %s30 = sphi 0, %s27
      %s31 = sphi 0, %s30
      %s47 = sphi 0, %s31
      %s51 = sphi 0, %s51
      %s53 = sphi 0, %s51
      %s54 = sphi 0, %s53
      %s68 = sphi 0, %s54
      %s72 = sphi 0, %s72
      %s74 = sphi 0, %s72
      %s75 = sphi 0, %s74
      %s89 = sphi 0, %s75
      %s93 = sphi 0, %s93
      %s95 = sphi 0, %s93
      %s96 = sphi 0, %s95
      %s110 = sphi 0, %s96
      %s114 = sphi 0, %s114
      %s116 = sphi 0, %s114
      %s117 = sphi 0, %s116
      %s131 = sphi 0, %s117
      %s135 = sphi 0, %s135
      %s137 = sphi 0, %s135
      %s138 = sphi 0, %s137
      %s152 = sphi 0, %s138
      %s156 = sphi 0, %s156
      %s158 = sphi 0, %s156
      %s159 = sphi 0, %s158
      %s173 = sphi 0, %s159
      %s177 = sphi 0, %s177
      %s179 = sphi 0, %s177
      %s180 = sphi 0, %s179
      %s194 = sphi 0, %s180
      %s200 = sphi 0, %s202
      %s203 = sphi 0, %s200
      %s204 = sphi 0, %s203
      %s220 = sphi 0, %s204
    $region4: #{spiking_self_attention_forward.1} parent=1 // loop_header_branch
      %20 = sbr.rel (%p18) target = $region8
    $region5: #{spiking_self_attention_forward.1} parent=1 // loop_body
      %s22 = ssub.s32 %s17, 1
      %s23 = ssub.s32 %s17, 2
      %s24 = sadd.s32 %s17, 1
      %s25 = ssub.s32 %s17, %s24
      %p26 = scmp.eq.s32.totalorder %s25, 0
      %s28 = sadd.s32 %s27, 1
      %s29 = scalar_select %p26, %s27, %s28
      %p32 = pneg %p26
      %p33 = scmp.eq.s32.totalorder %s17, 1
      %p34 = por %p32, %p33
      %p35 = scmp.ne.s32.totalorder %s27, %s30
      %p36 = scmp.eq.s32.totalorder %s17, 0
      %p37 = por %p35, %p36
      %p38 = scmp.ne.s32.totalorder %s27, %s30
      %p39 = scmp.eq.s32.totalorder %s22, 1
      %p40 = por %p38, %p39
      %p41 = scmp.ne.s32.totalorder %s30, %s31
      %p42 = scmp.eq.s32.totalorder %s22, 0
      %p43 = por %p41, %p42
      %p44 = scmp.ne.s32.totalorder %s30, %s31
      %p45 = scmp.eq.s32.totalorder %s23, 1
      %p46 = por %p44, %p45
      %p48 = scmp.ne.s32.totalorder %s31, %s47
      %p49 = scmp.eq.s32.totalorder %s23, 0
      %p50 = por %p48, %p49
      %s52 = sadd.s32 %s51, 1
      %p55 = scmp.eq.s32.totalorder %s17, 1
      %p56 = scmp.ne.s32.totalorder %s51, %s53
      %p57 = scmp.eq.s32.totalorder %s17, 0
      %p58 = por %p56, %p57
      %p59 = scmp.ne.s32.totalorder %s51, %s53
      %p60 = scmp.eq.s32.totalorder %s22, 1
      %p61 = por %p59, %p60
      %p62 = scmp.ne.s32.totalorder %s53, %s54
      %p63 = scmp.eq.s32.totalorder %s22, 0
      %p64 = por %p62, %p63
      %p65 = scmp.ne.s32.totalorder %s53, %s54
      %p66 = scmp.eq.s32.totalorder %s23, 1
      %p67 = por %p65, %p66
      %p69 = scmp.ne.s32.totalorder %s54, %s68
      %p70 = scmp.eq.s32.totalorder %s23, 0
      %p71 = por %p69, %p70
      %s73 = sadd.s32 %s72, 1
      %p76 = scmp.eq.s32.totalorder %s17, 1
      %p77 = scmp.ne.s32.totalorder %s72, %s74
      %p78 = scmp.eq.s32.totalorder %s17, 0
      %p79 = por %p77, %p78
      %p80 = scmp.ne.s32.totalorder %s72, %s74
      %p81 = scmp.eq.s32.totalorder %s22, 1
      %p82 = por %p80, %p81
      %p83 = scmp.ne.s32.totalorder %s74, %s75
      %p84 = scmp.eq.s32.totalorder %s22, 0
      %p85 = por %p83, %p84
      %p86 = scmp.ne.s32.totalorder %s74, %s75
      %p87 = scmp.eq.s32.totalorder %s23, 1
      %p88 = por %p86, %p87
      %p90 = scmp.ne.s32.totalorder %s75, %s89
      %p91 = scmp.eq.s32.totalorder %s23, 0
      %p92 = por %p90, %p91
      %s94 = sadd.s32 %s93, 1
      %p97 = scmp.eq.s32.totalorder %s17, 1
      %p98 = scmp.ne.s32.totalorder %s93, %s95
      %p99 = scmp.eq.s32.totalorder %s17, 0
      %p100 = por %p98, %p99
      %p101 = scmp.ne.s32.totalorder %s93, %s95
      %p102 = scmp.eq.s32.totalorder %s22, 1
      %p103 = por %p101, %p102
      %p104 = scmp.ne.s32.totalorder %s95, %s96
      %p105 = scmp.eq.s32.totalorder %s22, 0
      %p106 = por %p104, %p105
      %p107 = scmp.ne.s32.totalorder %s95, %s96
      %p108 = scmp.eq.s32.totalorder %s23, 1
      %p109 = por %p107, %p108
      %p111 = scmp.ne.s32.totalorder %s96, %s110
      %p112 = scmp.eq.s32.totalorder %s23, 0
      %p113 = por %p111, %p112
      %s115 = sadd.s32 %s114, 1
      %p118 = scmp.eq.s32.totalorder %s17, 1
      %p119 = scmp.ne.s32.totalorder %s114, %s116
      %p120 = scmp.eq.s32.totalorder %s17, 0
      %p121 = por %p119, %p120
      %p122 = scmp.ne.s32.totalorder %s114, %s116
      %p123 = scmp.eq.s32.totalorder %s22, 1
      %p124 = por %p122, %p123
      %p125 = scmp.ne.s32.totalorder %s116, %s117
      %p126 = scmp.eq.s32.totalorder %s22, 0
      %p127 = por %p125, %p126
      %p128 = scmp.ne.s32.totalorder %s116, %s117
      %p129 = scmp.eq.s32.totalorder %s23, 1
      %p130 = por %p128, %p129
      %p132 = scmp.ne.s32.totalorder %s117, %s131
      %p133 = scmp.eq.s32.totalorder %s23, 0
      %p134 = por %p132, %p133
      %s136 = sadd.s32 %s135, 1
      %p139 = scmp.eq.s32.totalorder %s17, 1
      %p140 = scmp.ne.s32.totalorder %s135, %s137
      %p141 = scmp.eq.s32.totalorder %s17, 0
      %p142 = por %p140, %p141
      %p143 = scmp.ne.s32.totalorder %s135, %s137
      %p144 = scmp.eq.s32.totalorder %s22, 1
      %p145 = por %p143, %p144
      %p146 = scmp.ne.s32.totalorder %s137, %s138
      %p147 = scmp.eq.s32.totalorder %s22, 0
      %p148 = por %p146, %p147
      %p149 = scmp.ne.s32.totalorder %s137, %s138
      %p150 = scmp.eq.s32.totalorder %s23, 1
      %p151 = por %p149, %p150
      %p153 = scmp.ne.s32.totalorder %s138, %s152
      %p154 = scmp.eq.s32.totalorder %s23, 0
      %p155 = por %p153, %p154
      %s157 = sadd.s32 %s156, 1
      %p160 = scmp.eq.s32.totalorder %s17, 1
      %p161 = scmp.ne.s32.totalorder %s156, %s158
      %p162 = scmp.eq.s32.totalorder %s17, 0
      %p163 = por %p161, %p162
      %p164 = scmp.ne.s32.totalorder %s156, %s158
      %p165 = scmp.eq.s32.totalorder %s22, 1
      %p166 = por %p164, %p165
      %p167 = scmp.ne.s32.totalorder %s158, %s159
      %p168 = scmp.eq.s32.totalorder %s22, 0
      %p169 = por %p167, %p168
      %p170 = scmp.ne.s32.totalorder %s158, %s159
      %p171 = scmp.eq.s32.totalorder %s23, 1
      %p172 = por %p170, %p171
      %p174 = scmp.ne.s32.totalorder %s159, %s173
      %p175 = scmp.eq.s32.totalorder %s23, 0
      %p176 = por %p174, %p175
      %s178 = sadd.s32 %s177, 1
      %p181 = scmp.eq.s32.totalorder %s17, 1
      %p182 = scmp.ne.s32.totalorder %s177, %s179
      %p183 = scmp.eq.s32.totalorder %s17, 0
      %p184 = por %p182, %p183
      %p185 = scmp.ne.s32.totalorder %s177, %s179
      %p186 = scmp.eq.s32.totalorder %s22, 1
      %p187 = por %p185, %p186
      %p188 = scmp.ne.s32.totalorder %s179, %s180
      %p189 = scmp.eq.s32.totalorder %s22, 0
      %p190 = por %p188, %p189
      %p191 = scmp.ne.s32.totalorder %s179, %s180
      %p192 = scmp.eq.s32.totalorder %s23, 1
      %p193 = por %p191, %p192
      %p195 = scmp.ne.s32.totalorder %s180, %s194
      %p196 = scmp.eq.s32.totalorder %s23, 0
      %p197 = por %p195, %p196
      %s198 = ssub.s32 %s17, %s24
      %p199 = scmp.eq.s32.totalorder %s198, 0
      %s201 = sadd.s32 %s200, 1
      %s202 = scalar_select %p199, %s200, %s201
      %p205 = pneg %p199
      %p206 = scmp.eq.s32.totalorder %s17, 1
      %p207 = por %p205, %p206
      %p208 = scmp.ne.s32.totalorder %s200, %s203
      %p209 = scmp.eq.s32.totalorder %s17, 0
      %p210 = por %p208, %p209
      %p211 = scmp.ne.s32.totalorder %s200, %s203
      %p212 = scmp.eq.s32.totalorder %s22, 1
      %p213 = por %p211, %p212
      %p214 = scmp.ne.s32.totalorder %s203, %s204
      %p215 = scmp.eq.s32.totalorder %s22, 0
      %p216 = por %p214, %p215
      %p217 = scmp.ne.s32.totalorder %s203, %s204
      %p218 = scmp.eq.s32.totalorder %s23, 1
      %p219 = por %p217, %p218
      %p221 = scmp.ne.s32.totalorder %s204, %s220
      %p222 = scmp.eq.s32.totalorder %s23, 0
      %p223 = por %p221, %p222
      %p224 = scmp.le.s32.totalorder 1, %s17
      %p225 = scmp.lt.s32.totalorder %s17, 3
      %p226 = pnand %p224, %p225
      %p227 = pneg %p226
      // Predicated region
      $region9: #{spiking_self_attention_forward.1} parent=5 // pred_check
        _
      $region10: #{spiking_self_attention_forward.1} parent=5 // pred_check_branch
        %229 = sbr.rel (%p226) target = $region12
      $region11: #{spiking_self_attention_forward.1} parent=5 // pred_region
        %s230 = ssub.s32 %s17, 1
        // Predicated region
        $region13: #{spiking_self_attention_forward.1} parent=11 // pred_check
          %p231 = pneg %p64
        $region14: #{spiking_self_attention_forward.1} parent=11 // pred_check_branch
          %233 = sbr.rel (%p231) target = $region16
        $region15: #{spiking_self_attention_forward.1} parent=11 // pred_region
          _
        $region16: #{spiking_self_attention_forward.1} parent=11 // pred_fallthru
          _
        // Predicated region
        $region17: #{spiking_self_attention_forward.1} parent=11 // pred_check
          %p234 = pneg %p85
        $region18: #{spiking_self_attention_forward.1} parent=11 // pred_check_branch
          %236 = sbr.rel (%p234) target = $region20
        $region19: #{spiking_self_attention_forward.1} parent=11 // pred_region
          _
        $region20: #{spiking_self_attention_forward.1} parent=11 // pred_fallthru
          _
        // Predicated region
        $region21: #{spiking_self_attention_forward.1} parent=11 // pred_check
          %p237 = pneg %p106
        $region22: #{spiking_self_attention_forward.1} parent=11 // pred_check_branch
          %239 = sbr.rel (%p237) target = $region24
        $region23: #{spiking_self_attention_forward.1} parent=11 // pred_region
          _
        $region24: #{spiking_self_attention_forward.1} parent=11 // pred_fallthru
          _
        // Predicated region
        $region25: #{spiking_self_attention_forward.1} parent=11 // pred_check
          %p240 = pneg %p127
        $region26: #{spiking_self_attention_forward.1} parent=11 // pred_check_branch
          %242 = sbr.rel (%p240) target = $region28
        $region27: #{spiking_self_attention_forward.1} parent=11 // pred_region
          _
        $region28: #{spiking_self_attention_forward.1} parent=11 // pred_fallthru
          _
        // Predicated region
        $region29: #{spiking_self_attention_forward.1} parent=11 // pred_check
          %p243 = pneg %p148
        $region30: #{spiking_self_attention_forward.1} parent=11 // pred_check_branch
          %245 = sbr.rel (%p243) target = $region32
        $region31: #{spiking_self_attention_forward.1} parent=11 // pred_region
          _
        $region32: #{spiking_self_attention_forward.1} parent=11 // pred_fallthru
          _
        // Predicated region
        $region33: #{spiking_self_attention_forward.1} parent=11 // pred_check
          %p246 = pneg %p169
        $region34: #{spiking_self_attention_forward.1} parent=11 // pred_check_branch
          %248 = sbr.rel (%p246) target = $region36
        $region35: #{spiking_self_attention_forward.1} parent=11 // pred_region
          _
        $region36: #{spiking_self_attention_forward.1} parent=11 // pred_fallthru
          _
        // Predicated region
        $region37: #{spiking_self_attention_forward.1} parent=11 // pred_check
          %p249 = pneg %p190
        $region38: #{spiking_self_attention_forward.1} parent=11 // pred_check_branch
          %251 = sbr.rel (%p249) target = $region40
        $region39: #{spiking_self_attention_forward.1} parent=11 // pred_region
          _
        $region40: #{spiking_self_attention_forward.1} parent=11 // pred_fallthru
          _
      $region12: #{spiking_self_attention_forward.1} parent=5 // pred_fallthru
        _
      %p252 = scmp.lt.s32.totalorder %s17, 2
      // Predicated region
      $region41: #{spiking_self_attention_forward.1} parent=5 // pred_check
        %p253 = pneg %p252
      $region42: #{spiking_self_attention_forward.1} parent=5 // pred_check_branch
        %255 = sbr.rel (%p253) target = $region44
      $region43: #{spiking_self_attention_forward.1} parent=5 // pred_region
        // Predicated region
        $region45: #{spiking_self_attention_forward.1} parent=43 // pred_check
          %p256 = pneg %p37
        $region46: #{spiking_self_attention_forward.1} parent=43 // pred_check_branch
          %258 = sbr.rel (%p256) target = $region48
        $region47: #{spiking_self_attention_forward.1} parent=43 // pred_region
          %p259 = scmp.lt.s32.totalorder %s17, 1
          %s260 = scalar_select %p259, %s17, 1
          %s261 = smul.addr %s260, 4
          %s262 = smul.addr %s261, 8
          %s263 = scalar_lea.vmem %s0, %s262
        $region48: #{spiking_self_attention_forward.1} parent=43 // pred_fallthru
          _
      $region44: #{spiking_self_attention_forward.1} parent=5 // pred_fallthru
        _
      %p264 = scmp.le.s32.totalorder 1, %s17
      %p265 = scmp.lt.s32.totalorder %s17, 3
      %p266 = pnand %p264, %p265
      %p267 = pneg %p266
      // Predicated region
      $region49: #{spiking_self_attention_forward.1} parent=5 // pred_check
        _
      $region50: #{spiking_self_attention_forward.1} parent=5 // pred_check_branch
        %269 = sbr.rel (%p266) target = $region52
      $region51: #{spiking_self_attention_forward.1} parent=5 // pred_region
        %s270 = ssub.s32 %s17, 1
        %p271 = scmp.lt.s32.totalorder %s22, 1
        %s272 = scalar_select %p271, %s22, 1
        %s273 = smul.addr %s272, 4
        %s274 = smul.addr %s273, 8
        %s275 = scalar_lea.vmem %s0, %s274
        %p276 = pneg %p43
        %p277 = pneg %p40
        %p278 = pneg %p64
        %p279 = pneg %p61
        %p280 = pneg %p85
        %p281 = pneg %p82
        %p282 = pneg %p106
        %p283 = pneg %p103
        %p284 = pneg %p127
        %p285 = pneg %p124
        %p286 = pneg %p148
        %p287 = pneg %p145
        %p288 = pneg %p169
        %p289 = pneg %p166
        %p290 = pneg %p190
        %p291 = pneg %p187
        %p292 = pneg %p216
        %p293 = pneg %p213
        %s294 = sand.u32 %s203, 1
        %s295 = scalar_lea.sflag [#allocation7], %s294
        %s296 = sand.u32 %s203, 1
        %s297 = smul.addr %s296, 32
        %s298 = scalar_lea.vmem [#allocation6], %s297
        %p299 = scmp.lt.s32.totalorder %s22, 1
        %s300 = scalar_select %p299, %s22, 1
        %s301 = smul.addr %s300, 4
        %s302 = smul.addr %s301, 8
        %s303 = scalar_lea.vmem %s0, %s302
        %v305 = vld [vmem:[%s1] sm:$0xff]
        %v306 = vld [vmem:[%s1 + $0x8] sm:$0xff]
        %v307 = vld [vmem:[%s1 + $0x10] sm:$0xff]
        %v308 = vld [vmem:[%s1 + $0x18] sm:$0xff]
        %v309 = vld [vmem:[%s2] sm:$0x1]
        %v310 = vld [vmem:[%s3] sm:$0xff]
        %v311 = vld [vmem:[%s3 + $0x8] sm:$0xff]
        %v312 = vld [vmem:[%s3 + $0x10] sm:$0xff]
        %v313 = vld [vmem:[%s3 + $0x18] sm:$0xff]
        %v314 = vld [vmem:[%s4] sm:$0x1]
        %v315 = vld [vmem:[%s5] sm:$0xf]
        %v316 = vld [vmem:[%s6] sm:$0xf]
        %v317 = vld [vmem:[%s7] sm:$0xff]
        %v318 = vld [vmem:[%s7 + $0x8] sm:$0xff]
        %v319 = vld [vmem:[%s7 + $0x10] sm:$0xff]
        %v320 = vld [vmem:[%s7 + $0x18] sm:$0xff]
        %v321 = vld [vmem:[%s303] sm:$0xff]
        %v322 = vld [vmem:[%s303 + $0x8] sm:$0xff]
        %v323 = vld [vmem:[%s303 + $0x10] sm:$0xff]
        %v324 = vld [vmem:[%s303 + $0x18] sm:$0xff]
        %v326 = vlaneseq
        %v327 = vshrl.u32 %v326, 7
        %v328 = vsub.s32 0, %v327
        %v329 = vrot.slane %v309, %v328
        %vm331 = vcmask 261120
        %v333 = vsel %vm331, %v321, 0
        %v336 = vsel %vm331, %v322, 0
        %v339 = vsel %vm331, %v323, 0
        %v342 = vsel %vm331, %v324, 0
        %344 = vmatprep.subr.mxu0 0.0
        %345 = vmatpush1.msra.mxu0 %v305
        %346 = vmatprep.subr.mxu0 0.0
        %347 = vmatpush1.msra.mxu0 %v306
        %348 = vmatprep.subr.mxu0 0.0
        %349 = vmatpush1.msra.mxu0 %v307
        %350 = vmatprep.subr.mxu0 0.0
        %351 = vmatpush1.msra.mxu0 %v308
        %352 = vmatprep.subr.mxu0 0.0
        %353 = vmatpush1.msra.mxu0 0.0
        %354 = vmatprep.subr.mxu0 0.0
        %355 = vmatpush1.msra.mxu0 0.0
        %356 = vmatprep.subr.mxu0 0.0
        %357 = vmatpush1.msra.mxu0 0.0
        %358 = vmatprep.subr.mxu0 0.0
        %359 = vmatpush1.msra.mxu0 0.0
        %360 = vmatprep.subr.mxu0 0.0
        %361 = vmatpush1.msra.mxu0 0.0
        %362 = vmatprep.subr.mxu0 0.0
        %363 = vmatpush1.msra.mxu0 0.0
        %364 = vmatprep.subr.mxu0 0.0
        %365 = vmatpush1.msra.mxu0 0.0
        %366 = vmatprep.subr.mxu0 0.0
        %367 = vmatpush1.msra.mxu0 0.0
        %368 = vmatprep.subr.mxu0 0.0
        %369 = vmatpush1.msra.mxu0 0.0
        %370 = vmatprep.subr.mxu0 0.0
        %371 = vmatpush1.msra.mxu0 0.0
        %372 = vmatprep.subr.mxu0 0.0
        %373 = vmatpush1.msra.mxu0 0.0
        %374 = vmatprep.subr.mxu0 0.0
        %375 = vmatpush1.msra.mxu0 0.0
        %376 = vmatprep.subr.mxu0 0.0
        %377 = vmatpush1.msra.mxu0 0.0
        %378 = vmatprep.subr.mxu0 0.0
        %379 = vmatpush1.msra.mxu0 0.0
        %380 = vmatprep.subr.mxu0 0.0
        %381 = vmatpush1.msra.mxu0 0.0
        %382 = vmatprep.subr.mxu0 0.0
        %383 = vmatpush1.msra.mxu0 0.0
        %384 = vmatprep.subr.mxu0 0.0
        %385 = vmatpush1.msra.mxu0 0.0
        %386 = vmatprep.subr.mxu0 0.0
        %387 = vmatpush1.msra.mxu0 0.0
        %388 = vmatprep.subr.mxu0 0.0
        %389 = vmatpush1.msra.mxu0 0.0
        %390 = vmatprep.subr.mxu0 0.0
        %391 = vmatpush1.msra.mxu0 0.0
        %392 = vmatprep.subr.mxu0 0.0
        %393 = vmatpush1.msra.mxu0 0.0
        %394 = vmatprep.subr.mxu0 0.0
        %395 = vmatpush1.msra.mxu0 0.0
        %396 = vmatprep.subr.mxu0 0.0
        %397 = vmatpush1.msra.mxu0 0.0
        %398 = vmatprep.subr.mxu0 0.0
        %399 = vmatpush1.msra.mxu0 0.0
        %400 = vmatprep.subr.mxu0 0.0
        %401 = vmatpush1.msra.mxu0 0.0
        %402 = vmatprep.subr.mxu0 0.0
        %403 = vmatpush1.msra.mxu0 0.0
        %404 = vmatprep.subr.mxu0 0.0
        %405 = vmatpush1.msra.mxu0 0.0
        %406 = vmatprep.subr.mxu0 0.0
        %407 = vmatpush1.msra.mxu0 0.0
        %408 = vmatprep.mubr.f32.mxu0 0.0
        %409 = vmatmul.mubr.f32.gmra.mrb[0].mxu0 %v333
        %v410 = vpop.f32.mrb[0].mxu0
        %v411 = vadd.f32 %v329, %v410
        %v412 = vpop.f32.mrb[0].mxu0
        %413 = vmatprep.mubr.f32.mxu0 0.0
        %414 = vmatmul.mubr.f32.gmra.mrb[0].mxu0 %v336
        %v415 = vpop.f32.mrb[0].mxu0
        %v416 = vadd.f32 %v329, %v415
        %v417 = vpop.f32.mrb[0].mxu0
        %418 = vmatprep.mubr.f32.mxu0 0.0
        %419 = vmatmul.mubr.f32.gmra.mrb[0].mxu0 %v339
        %v420 = vpop.f32.mrb[0].mxu0
        %v421 = vadd.f32 %v329, %v420
        %v422 = vpop.f32.mrb[0].mxu0
        %423 = vmatprep.mubr.f32.mxu0 0.0
        %424 = vmatmul.mubr.f32.gmra.mrb[0].mxu0 %v342
        %v425 = vpop.f32.mrb[0].mxu0
        %v426 = vadd.f32 %v329, %v425
        %v427 = vpop.f32.mrb[0].mxu0
        %428 = vdwg.mxu0
        %v429 = vsel %vm331, %v411, 0.0
        %430 = vadd.xlane.f32.xlu0 %v429
        %v431 = vpop.xlane.xlu0 %430
        %v432 = vsel %vm331, %v416, 0.0
        %433 = vadd.xlane.f32.xlu0 %v432
        %v434 = vpop.xlane.xlu0 %433
        %v435 = vsel %vm331, %v421, 0.0
        %436 = vadd.xlane.f32.xlu0 %v435
        %v437 = vpop.xlane.xlu0 %436
        %v438 = vsel %vm331, %v426, 0.0
        %439 = vadd.xlane.f32.xlu0 %v438
        %v440 = vpop.xlane.xlu0 %439
        %v441 = vrcp.pop 32.0
        %v442 = vmul.f32 %v431, %v441
        %v443 = vmul.f32 %v434, %v441
        %v444 = vmul.f32 %v437, %v441
        %v445 = vmul.f32 %v440, %v441
        %v446 = vmul.f32 %v411, %v411
        %v447 = vmul.f32 %v416, %v416
        %v448 = vmul.f32 %v421, %v421
        %v449 = vmul.f32 %v426, %v426
        %v450 = vsel %vm331, %v446, 0.0
        %451 = vadd.xlane.f32.xlu0 %v450
        %v452 = vpop.xlane.xlu0 %451
        %v453 = vsel %vm331, %v447, 0.0
        %454 = vadd.xlane.f32.xlu0 %v453
        %v455 = vpop.xlane.xlu0 %454
        %v456 = vsel %vm331, %v448, 0.0
        %457 = vadd.xlane.f32.xlu0 %v456
        %v458 = vpop.xlane.xlu0 %457
        %v459 = vsel %vm331, %v449, 0.0
        %460 = vadd.xlane.f32.xlu0 %v459
        %v461 = vpop.xlane.xlu0 %460
        %v462 = vmul.f32 %v452, %v441
        %v463 = vmul.f32 %v455, %v441
        %v464 = vmul.f32 %v458, %v441
        %v465 = vmul.f32 %v461, %v441
        %v466 = vmul.f32 %v442, %v442
        %v467 = vmul.f32 %v443, %v443
        %v468 = vmul.f32 %v444, %v444
        %v469 = vmul.f32 %v445, %v445
        %v470 = vsub.f32 %v462, %v466
        %v471 = vsub.f32 %v463, %v467
        %v472 = vsub.f32 %v464, %v468
        %v473 = vsub.f32 %v465, %v469
        %v474 = vsub.f32 %v411, %v442
        %v475 = vsub.f32 %v416, %v443
        %v476 = vsub.f32 %v421, %v444
        %v477 = vsub.f32 %v426, %v445
        %v478 = vadd.f32 %v470, 1e-05
        %v479 = vadd.f32 %v471, 1e-05
        %v480 = vadd.f32 %v472, 1e-05
        %v481 = vadd.f32 %v473, 1e-05
        %v482 = vrsqrt.pop %v478
        %v483 = vrsqrt.pop %v479
        %v484 = vrsqrt.pop %v480
        %v485 = vrsqrt.pop %v481
        %v486 = vmul.f32 %v474, %v482
        %v487 = vmul.f32 %v475, %v483
        %v488 = vmul.f32 %v476, %v484
        %v489 = vmul.f32 %v477, %v485
        %v490 = vlaneseq
        %v491 = vshrl.u32 %v490, 7
        %v492 = vsub.s32 0, %v491
        %v493 = vrot.slane %v315, %v492
        %v494 = vmul.f32 %v486, %v493
        %v495 = vmul.f32 %v487, %v493
        %v496 = vmul.f32 %v488, %v493
        %v497 = vmul.f32 %v489, %v493
        %v498 = vlaneseq
        %v499 = vshrl.u32 %v498, 7
        %v500 = vsub.s32 0, %v499
        %v501 = vrot.slane %v316, %v500
        %v502 = vadd.f32 %v494, %v501
        %v503 = vadd.f32 %v495, %v501
        %v504 = vadd.f32 %v496, %v501
        %v505 = vadd.f32 %v497, %v501
        %506 = vst.msk [vmem:[#allocation2] sm:$0xff] %vm331, %v502
        %507 = vst.msk [vmem:[#allocation2 + $0x8] sm:$0xff] %vm331, %v503
        %508 = vst.msk [vmem:[#allocation2 + $0x10] sm:$0xff] %vm331, %v504
        %509 = vst.msk [vmem:[#allocation2 + $0x18] sm:$0xff] %vm331, %v505
        %514 = vrot.lane.b32.xlu0 %v411, 96
        %v515 = vpop.permute.xlu0 %514
        %516 = vrot.lane.b32.xlu0 %v416, 96
        %v517 = vpop.permute.xlu0 %516
        %518 = vrot.lane.b32.xlu0 %v421, 96
        %v519 = vpop.permute.xlu0 %518
        %520 = vrot.lane.b32.xlu0 %v426, 96
        %v521 = vpop.permute.xlu0 %520
        %v526 = vsel %vm331, %v515, 0.0
        %527 = vadd.xlane.f32.xlu0 %v526
        %v528 = vpop.xlane.xlu0 %527
        %v529 = vsel %vm331, %v517, 0.0
        %530 = vadd.xlane.f32.xlu0 %v529
        %v531 = vpop.xlane.xlu0 %530
        %v532 = vsel %vm331, %v519, 0.0
        %533 = vadd.xlane.f32.xlu0 %v532
        %v534 = vpop.xlane.xlu0 %533
        %v535 = vsel %vm331, %v521, 0.0
        %536 = vadd.xlane.f32.xlu0 %v535
        %v537 = vpop.xlane.xlu0 %536
        %v538 = vmul.f32 %v528, %v441
        %v539 = vmul.f32 %v531, %v441
        %v540 = vmul.f32 %v534, %v441
        %v541 = vmul.f32 %v537, %v441
        %546 = vrot.lane.b32.xlu0 %v446, 96
        %v547 = vpop.permute.xlu0 %546
        %548 = vrot.lane.b32.xlu0 %v447, 96
        %v549 = vpop.permute.xlu0 %548
        %550 = vrot.lane.b32.xlu0 %v448, 96
        %v551 = vpop.permute.xlu0 %550
        %552 = vrot.lane.b32.xlu0 %v449, 96
        %v553 = vpop.permute.xlu0 %552
        %v558 = vsel %vm331, %v547, 0.0
        %559 = vadd.xlane.f32.xlu0 %v558
        %v560 = vpop.xlane.xlu0 %559
        %v561 = vsel %vm331, %v549, 0.0
        %562 = vadd.xlane.f32.xlu0 %v561
        %v563 = vpop.xlane.xlu0 %562
        %v564 = vsel %vm331, %v551, 0.0
        %565 = vadd.xlane.f32.xlu0 %v564
        %v566 = vpop.xlane.xlu0 %565
        %v567 = vsel %vm331, %v553, 0.0
        %568 = vadd.xlane.f32.xlu0 %v567
        %v569 = vpop.xlane.xlu0 %568
        %v570 = vmul.f32 %v560, %v441
        %v571 = vmul.f32 %v563, %v441
        %v572 = vmul.f32 %v566, %v441
        %v573 = vmul.f32 %v569, %v441
        %v574 = vmul.f32 %v538, %v538
        %v575 = vmul.f32 %v539, %v539
        %v576 = vmul.f32 %v540, %v540
        %v577 = vmul.f32 %v541, %v541
        %v578 = vsub.f32 %v570, %v574
        %v579 = vsub.f32 %v571, %v575
        %v580 = vsub.f32 %v572, %v576
        %v581 = vsub.f32 %v573, %v577
        %v582 = vsub.f32 %v411, %v538
        %v583 = vsub.f32 %v416, %v539
        %v584 = vsub.f32 %v421, %v540
        %v585 = vsub.f32 %v426, %v541
        %v586 = vadd.f32 %v578, 1e-05
        %v587 = vadd.f32 %v579, 1e-05
        %v588 = vadd.f32 %v580, 1e-05
        %v589 = vadd.f32 %v581, 1e-05
        %v590 = vrsqrt.pop %v586
        %v591 = vrsqrt.pop %v587
        %v592 = vrsqrt.pop %v588
        %v593 = vrsqrt.pop %v589
        %v594 = vmul.f32 %v582, %v590
        %v595 = vmul.f32 %v583, %v591
        %v596 = vmul.f32 %v584, %v592
        %v597 = vmul.f32 %v585, %v593
        %v598 = vlaneseq
        %v599 = vshrl.u32 %v598, 7
        %v600 = vsub.s32 1, %v599
        %v601 = vrot.slane %v315, %v600
        %603 = vrot.lane.b32.xlu0 %v601, 32
        %v604 = vpop.permute.xlu0 %603
        %v606 = vmul.f32 %v594, %v604
        %v607 = vmul.f32 %v595, %v604
        %v608 = vmul.f32 %v596, %v604
        %v609 = vmul.f32 %v597, %v604
        %v610 = vlaneseq
        %v611 = vshrl.u32 %v610, 7
        %v612 = vsub.s32 1, %v611
        %v613 = vrot.slane %v316, %v612
        %615 = vrot.lane.b32.xlu0 %v613, 32
        %v616 = vpop.permute.xlu0 %615
        %v618 = vadd.f32 %v606, %v616
        %v619 = vadd.f32 %v607, %v616
        %v620 = vadd.f32 %v608, %v616
        %v621 = vadd.f32 %v609, %v616
        %626 = vrot.lane.b32.xlu0 %v618, 96
        %v627 = vpop.permute.xlu0 %626
        %628 = vrot.lane.b32.xlu0 %v619, 96
        %v629 = vpop.permute.xlu0 %628
        %630 = vrot.lane.b32.xlu0 %v620, 96
        %v631 = vpop.permute.xlu0 %630
        %632 = vrot.lane.b32.xlu0 %v621, 96
        %v633 = vpop.permute.xlu0 %632
        %638 = vst.msk [vmem:[#allocation3] sm:$0xff] %vm331, %v627
        %639 = vst.msk [vmem:[#allocation3 + $0x8] sm:$0xff] %vm331, %v629
        %640 = vst.msk [vmem:[#allocation3 + $0x10] sm:$0xff] %vm331, %v631
        %641 = vst.msk [vmem:[#allocation3 + $0x18] sm:$0xff] %vm331, %v633
        %642 = vrot.lane.b32.xlu0 %v411, 64
        %v643 = vpop.permute.xlu0 %642
        %644 = vrot.lane.b32.xlu0 %v416, 64
        %v645 = vpop.permute.xlu0 %644
        %646 = vrot.lane.b32.xlu0 %v421, 64
        %v647 = vpop.permute.xlu0 %646
        %648 = vrot.lane.b32.xlu0 %v426, 64
        %v649 = vpop.permute.xlu0 %648
        %v654 = vsel %vm331, %v643, 0.0
        %655 = vadd.xlane.f32.xlu0 %v654
        %v656 = vpop.xlane.xlu0 %655
        %v657 = vsel %vm331, %v645, 0.0
        %658 = vadd.xlane.f32.xlu0 %v657
        %v659 = vpop.xlane.xlu0 %658
        %v660 = vsel %vm331, %v647, 0.0
        %661 = vadd.xlane.f32.xlu0 %v660
        %v662 = vpop.xlane.xlu0 %661
        %v663 = vsel %vm331, %v649, 0.0
        %664 = vadd.xlane.f32.xlu0 %v663
        %v665 = vpop.xlane.xlu0 %664
        %v666 = vmul.f32 %v656, %v441
        %v667 = vmul.f32 %v659, %v441
        %v668 = vmul.f32 %v662, %v441
        %v669 = vmul.f32 %v665, %v441
        %670 = vrot.lane.b32.xlu0 %v446, 64
        %v671 = vpop.permute.xlu0 %670
        %672 = vrot.lane.b32.xlu0 %v447, 64
        %v673 = vpop.permute.xlu0 %672
        %674 = vrot.lane.b32.xlu0 %v448, 64
        %v675 = vpop.permute.xlu0 %674
        %676 = vrot.lane.b32.xlu0 %v449, 64
        %v677 = vpop.permute.xlu0 %676
        %v682 = vsel %vm331, %v671, 0.0
        %683 = vadd.xlane.f32.xlu0 %v682
        %v684 = vpop.xlane.xlu0 %683
        %v685 = vsel %vm331, %v673, 0.0
        %686 = vadd.xlane.f32.xlu0 %v685
        %v687 = vpop.xlane.xlu0 %686
        %v688 = vsel %vm331, %v675, 0.0
        %689 = vadd.xlane.f32.xlu0 %v688
        %v690 = vpop.xlane.xlu0 %689
        %v691 = vsel %vm331, %v677, 0.0
        %692 = vadd.xlane.f32.xlu0 %v691
        %v693 = vpop.xlane.xlu0 %692
        %v694 = vmul.f32 %v684, %v441
        %v695 = vmul.f32 %v687, %v441
        %v696 = vmul.f32 %v690, %v441
        %v697 = vmul.f32 %v693, %v441
        %v698 = vmul.f32 %v666, %v666
        %v699 = vmul.f32 %v667, %v667
        %v700 = vmul.f32 %v668, %v668
        %v701 = vmul.f32 %v669, %v669
        %v702 = vsub.f32 %v694, %v698
        %v703 = vsub.f32 %v695, %v699
        %v704 = vsub.f32 %v696, %v700
        %v705 = vsub.f32 %v697, %v701
        %v706 = vsub.f32 %v411, %v666
        %v707 = vsub.f32 %v416, %v667
        %v708 = vsub.f32 %v421, %v668
        %v709 = vsub.f32 %v426, %v669
        %v710 = vadd.f32 %v702, 1e-05
        %v711 = vadd.f32 %v703, 1e-05
        %v712 = vadd.f32 %v704, 1e-05
        %v713 = vadd.f32 %v705, 1e-05
        %v714 = vrsqrt.pop %v710
        %v715 = vrsqrt.pop %v711
        %v716 = vrsqrt.pop %v712
        %v717 = vrsqrt.pop %v713
        %v718 = vmul.f32 %v706, %v714
        %v719 = vmul.f32 %v707, %v715
        %v720 = vmul.f32 %v708, %v716
        %v721 = vmul.f32 %v709, %v717
        %v722 = vlaneseq
        %v723 = vshrl.u32 %v722, 7
        %v724 = vsub.s32 2, %v723
        %v725 = vrot.slane %v315, %v724
        %727 = vrot.lane.b32.xlu0 %v725, 64
        %v728 = vpop.permute.xlu0 %727
        %v730 = vmul.f32 %v718, %v728
        %v731 = vmul.f32 %v719, %v728
        %v732 = vmul.f32 %v720, %v728
        %v733 = vmul.f32 %v721, %v728
        %v734 = vlaneseq
        %v735 = vshrl.u32 %v734, 7
        %v736 = vsub.s32 2, %v735
        %v737 = vrot.slane %v316, %v736
        %739 = vrot.lane.b32.xlu0 %v737, 64
        %v740 = vpop.permute.xlu0 %739
        %v742 = vadd.f32 %v730, %v740
        %v743 = vadd.f32 %v731, %v740
        %v744 = vadd.f32 %v732, %v740
        %v745 = vadd.f32 %v733, %v740
        %750 = vrot.lane.b32.xlu0 %v742, 64
        %v751 = vpop.permute.xlu0 %750
        %752 = vrot.lane.b32.xlu0 %v743, 64
        %v753 = vpop.permute.xlu0 %752
        %754 = vrot.lane.b32.xlu0 %v744, 64
        %v755 = vpop.permute.xlu0 %754
        %756 = vrot.lane.b32.xlu0 %v745, 64
        %v757 = vpop.permute.xlu0 %756
        %762 = vst.msk [vmem:[#allocation4] sm:$0xff] %vm331, %v751
        %763 = vst.msk [vmem:[#allocation4 + $0x8] sm:$0xff] %vm331, %v753
        %764 = vst.msk [vmem:[#allocation4 + $0x10] sm:$0xff] %vm331, %v755
        %765 = vst.msk [vmem:[#allocation4 + $0x18] sm:$0xff] %vm331, %v757
        %v766 = vld [vmem:[#allocation2] sm:$0xff]
        %v767 = vmul.f32 %v766, 0.5
        %v768 = vadd.f32 %v767, 0.0
        %vm769 = vcmp.ge.f32.partialorder %v768, 1.0
        %v770 = vsel %vm769, 1, 0
        %v771 = vcvt.s32.f32 %v770
        %772 = vst.msk [vmem:[#allocation2] sm:$0xff] %vm331, %v771
        %v773 = vsel %vm769, 0.0, %v768
        %v774 = vld [vmem:[#allocation3] sm:$0xff]
        %v775 = vmul.f32 %v774, 0.5
        %v776 = vadd.f32 %v775, 0.0
        %vm777 = vcmp.ge.f32.partialorder %v776, 1.0
        %v778 = vsel %vm777, 1, 0
        %v779 = vcvt.s32.f32 %v778
        %780 = vst.msk [vmem:[#allocation3] sm:$0xff] %vm331, %v779
        %v781 = vsel %vm777, 0.0, %v776
        %v782 = vld [vmem:[#allocation4] sm:$0xff]
        %v783 = vmul.f32 %v782, 0.5
        %v784 = vadd.f32 %v783, 0.0
        %vm785 = vcmp.ge.f32.partialorder %v784, 1.0
        %v786 = vsel %vm785, 1, 0
        %v787 = vcvt.s32.f32 %v786
        %788 = vst.msk [vmem:[#allocation4] sm:$0xff] %vm331, %v787
        %v789 = vsel %vm785, 0.0, %v784
        %s790 = scalar_lea.vmem [#allocation2], 8
        %v791 = vld [vmem:[%s790] sm:$0xff]
        %v792 = vsub.f32 %v791, %v773
        %v793 = vmul.f32 %v792, 0.5
        %v794 = vadd.f32 %v773, %v793
        %vm795 = vcmp.ge.f32.partialorder %v794, 1.0
        %v796 = vsel %vm795, 1, 0
        %v797 = vcvt.s32.f32 %v796
        %798 = vst.msk [vmem:[%s790] sm:$0xff] %vm331, %v797
        %v799 = vsel %vm795, 0.0, %v794
        %s800 = scalar_lea.vmem [#allocation3], 8
        %v801 = vld [vmem:[%s800] sm:$0xff]
        %v802 = vsub.f32 %v801, %v781
        %v803 = vmul.f32 %v802, 0.5
        %v804 = vadd.f32 %v781, %v803
        %vm805 = vcmp.ge.f32.partialorder %v804, 1.0
        %v806 = vsel %vm805, 1, 0
        %v807 = vcvt.s32.f32 %v806
        %808 = vst.msk [vmem:[%s800] sm:$0xff] %vm331, %v807
        %v809 = vsel %vm805, 0.0, %v804
        %s810 = scalar_lea.vmem [#allocation4], 8
        %v811 = vld [vmem:[%s810] sm:$0xff]
        %v812 = vsub.f32 %v811, %v789
        %v813 = vmul.f32 %v812, 0.5
        %v814 = vadd.f32 %v789, %v813
        %vm815 = vcmp.ge.f32.partialorder %v814, 1.0
        %v816 = vsel %vm815, 1, 0
        %v817 = vcvt.s32.f32 %v816
        %818 = vst.msk [vmem:[%s810] sm:$0xff] %vm331, %v817
        %v819 = vsel %vm815, 0.0, %v814
        %s820 = scalar_lea.vmem [#allocation2], 16
        %v821 = vld [vmem:[%s820] sm:$0xff]
        %v822 = vsub.f32 %v821, %v799
        %v823 = vmul.f32 %v822, 0.5
        %v824 = vadd.f32 %v799, %v823
        %vm825 = vcmp.ge.f32.partialorder %v824, 1.0
        %v826 = vsel %vm825, 1, 0
        %v827 = vcvt.s32.f32 %v826
        %828 = vst.msk [vmem:[%s820] sm:$0xff] %vm331, %v827
        %v829 = vsel %vm825, 0.0, %v824
        %s830 = scalar_lea.vmem [#allocation3], 16
        %v831 = vld [vmem:[%s830] sm:$0xff]
        %v832 = vsub.f32 %v831, %v809
        %v833 = vmul.f32 %v832, 0.5
        %v834 = vadd.f32 %v809, %v833
        %vm835 = vcmp.ge.f32.partialorder %v834, 1.0
        %v836 = vsel %vm835, 1, 0
        %v837 = vcvt.s32.f32 %v836
        %838 = vst.msk [vmem:[%s830] sm:$0xff] %vm331, %v837
        %v839 = vsel %vm835, 0.0, %v834
        %s840 = scalar_lea.vmem [#allocation4], 16
        %v841 = vld [vmem:[%s840] sm:$0xff]
        %v842 = vsub.f32 %v841, %v819
        %v843 = vmul.f32 %v842, 0.5
        %v844 = vadd.f32 %v819, %v843
        %vm845 = vcmp.ge.f32.partialorder %v844, 1.0
        %v846 = vsel %vm845, 1, 0
        %v847 = vcvt.s32.f32 %v846
        %848 = vst.msk [vmem:[%s840] sm:$0xff] %vm331, %v847
        %v849 = vsel %vm845, 0.0, %v844
        %s850 = scalar_lea.vmem [#allocation2], 24
        %v851 = vld [vmem:[%s850] sm:$0xff]
        %v852 = vsub.f32 %v851, %v829
        %v853 = vmul.f32 %v852, 0.5
        %v854 = vadd.f32 %v829, %v853
        %vm855 = vcmp.ge.f32.partialorder %v854, 1.0
        %v856 = vsel %vm855, 1, 0
        %v857 = vcvt.s32.f32 %v856
        %858 = vst.msk [vmem:[%s850] sm:$0xff] %vm331, %v857
        %s859 = scalar_lea.vmem [#allocation3], 24
        %v860 = vld [vmem:[%s859] sm:$0xff]
        %v861 = vsub.f32 %v860, %v839
        %v862 = vmul.f32 %v861, 0.5
        %v863 = vadd.f32 %v839, %v862
        %vm864 = vcmp.ge.f32.partialorder %v863, 1.0
        %v865 = vsel %vm864, 1, 0
        %v866 = vcvt.s32.f32 %v865
        %867 = vst.msk [vmem:[%s859] sm:$0xff] %vm331, %v866
        %s868 = scalar_lea.vmem [#allocation4], 24
        %v869 = vld [vmem:[%s868] sm:$0xff]
        %v870 = vsub.f32 %v869, %v849
        %v871 = vmul.f32 %v870, 0.5
        %v872 = vadd.f32 %v849, %v871
        %vm873 = vcmp.ge.f32.partialorder %v872, 1.0
        %v874 = vsel %vm873, 1, 0
        %v875 = vcvt.s32.f32 %v874
        %876 = vst.msk [vmem:[%s868] sm:$0xff] %vm331, %v875
        %v877 = vld [vmem:[#allocation2] sm:$0xff]
        %v878 = vld [vmem:[#allocation2 + $0x8] sm:$0xff]
        %v879 = vld [vmem:[#allocation2 + $0x10] sm:$0xff]
        %v880 = vld [vmem:[#allocation2 + $0x18] sm:$0xff]
        %v881 = vpack.c.bf16 %v877, %v877
        %v882 = vpack.c.bf16 %v878, %v878
        %v883 = vpack.c.bf16 %v879, %v879
        %v884 = vpack.c.bf16 %v880, %v880
        %v885 = vld [vmem:[#allocation3] sm:$0xff]
        %v886 = vld [vmem:[#allocation3 + $0x8] sm:$0xff]
        %v887 = vld [vmem:[#allocation3 + $0x10] sm:$0xff]
        %v888 = vld [vmem:[#allocation3 + $0x18] sm:$0xff]
        %v889 = vpack.c.bf16 %v885, %v885
        %v890 = vpack.c.bf16 %v886, %v886
        %v891 = vpack.c.bf16 %v887, %v887
        %v892 = vpack.c.bf16 %v888, %v888
        %v893 = vld [vmem:[#allocation4] sm:$0xff]
        %v894 = vld [vmem:[#allocation4 + $0x8] sm:$0xff]
        %v895 = vld [vmem:[#allocation4 + $0x10] sm:$0xff]
        %v896 = vld [vmem:[#allocation4 + $0x18] sm:$0xff]
        %v897 = vpack.c.bf16 %v893, %v893
        %v898 = vpack.c.bf16 %v894, %v894
        %v899 = vpack.c.bf16 %v895, %v895
        %v900 = vpack.c.bf16 %v896, %v896
        %901 = vxpose.xlu0.c.b16.start [1/8] %v889, 128
        %902 = vxpose.xlu0.c.b16.cont [2/8] 0, 128
        %903 = vxpose.xlu0.c.b16.cont [3/8] 0, 128
        %904 = vxpose.xlu0.c.b16.cont [4/8] 0, 128
        %905 = vxpose.xlu0.c.b16.cont [5/8] 0, 128
        %906 = vxpose.xlu0.c.b16.cont [6/8] 0, 128
        %907 = vxpose.xlu0.c.b16.cont [7/8] 0, 128
        %908 = vxpose.xlu0.c.b16.end [8/8] 0, 128
        %v909 = vpop.trf.xlu0
        %v910 = vpop.trf.xlu0
        %v911 = vpop.trf.xlu0
        %v912 = vpop.trf.xlu0
        %v913 = vpop.trf.xlu0
        %v914 = vpop.trf.xlu0
        %v915 = vpop.trf.xlu0
        %v916 = vpop.trf.xlu0
        %vm917 = vcmask 64512
        %v919 = vsel %vm917, %v909, 0
        %v922 = vsel %vm917, %v910, 0
        %vm924 = vcmask 1043456
        %v926 = vsel %vm924, %v897, 0
        %928 = vmatprep.subr.bf16.mxu0 0
        %929 = vmatpush1.bf16.msra.mxu0 %v926
        %930 = vmatprep.subr.bf16.mxu0 0
        %931 = vmatpush1.bf16.msra.mxu0 0
        %932 = vmatprep.subr.bf16.mxu0 0
        %933 = vmatpush1.bf16.msra.mxu0 0
        %934 = vmatprep.subr.bf16.mxu0 0
        %935 = vmatpush1.bf16.msra.mxu0 0
        %936 = vmatprep.subr.bf16.mxu0 0
        %937 = vmatpush1.bf16.msra.mxu0 0
        %938 = vmatprep.subr.bf16.mxu0 0
        %939 = vmatpush1.bf16.msra.mxu0 0
        %940 = vmatprep.subr.bf16.mxu0 0
        %941 = vmatpush1.bf16.msra.mxu0 0
        %942 = vmatprep.subr.bf16.mxu0 0
        %943 = vmatpush1.bf16.msra.mxu0 0
        %944 = vmatprep.subr.bf16.mxu0 0
        %945 = vmatpush1.bf16.msra.mxu0 0
        %946 = vmatprep.subr.bf16.mxu0 0
        %947 = vmatpush1.bf16.msra.mxu0 0
        %948 = vmatprep.subr.bf16.mxu0 0
        %949 = vmatpush1.bf16.msra.mxu0 0
        %950 = vmatprep.subr.bf16.mxu0 0
        %951 = vmatpush1.bf16.msra.mxu0 0
        %952 = vmatprep.subr.bf16.mxu0 0
        %953 = vmatpush1.bf16.msra.mxu0 0
        %954 = vmatprep.subr.bf16.mxu0 0
        %955 = vmatpush1.bf16.msra.mxu0 0
        %956 = vmatprep.subr.bf16.mxu0 0
        %957 = vmatpush1.bf16.msra.mxu0 0
        %958 = vmatprep.subr.bf16.mxu0 0
        %959 = vmatpush1.bf16.msra.mxu0 0
        %960 = vmatprep.mubr.bf16.mxu0 0
        %961 = vmatmul.mubr.bf16.gmra.mrb[0].mxu0 %v919
        %v962 = vpop.f32.mrb[0].mxu0
        %v963 = vadd.f32 0.0, %v962
        %v964 = vpop.f32.mrb[0].mxu0
        %v965 = vpop.f32.mrb[0].mxu0
        %v966 = vadd.f32 0.0, %v965
        %v967 = vpop.f32.mrb[0].mxu0
        %968 = vmatprep.mubr.bf16.mxu0 0
        %969 = vmatmul.mubr.bf16.gmra.mrb[0].mxu0 %v922
        %v970 = vpop.f32.mrb[0].mxu0
        %v971 = vadd.f32 0.0, %v970
        %v972 = vpop.f32.mrb[0].mxu0
        %v973 = vpop.f32.mrb[0].mxu0
        %v974 = vadd.f32 0.0, %v973
        %v975 = vpop.f32.mrb[0].mxu0
        %976 = vdwg.mxu0
        %977 = vxpose.xlu0.c.b16.start [1/8] %v890, 128
        %978 = vxpose.xlu0.c.b16.cont [2/8] 0, 128
        %979 = vxpose.xlu0.c.b16.cont [3/8] 0, 128
        %980 = vxpose.xlu0.c.b16.cont [4/8] 0, 128
        %981 = vxpose.xlu0.c.b16.cont [5/8] 0, 128
        %982 = vxpose.xlu0.c.b16.cont [6/8] 0, 128
        %983 = vxpose.xlu0.c.b16.cont [7/8] 0, 128
        %984 = vxpose.xlu0.c.b16.end [8/8] 0, 128
        %v985 = vpop.trf.xlu0
        %v986 = vpop.trf.xlu0
        %v987 = vpop.trf.xlu0
        %v988 = vpop.trf.xlu0
        %v989 = vpop.trf.xlu0
        %v990 = vpop.trf.xlu0
        %v991 = vpop.trf.xlu0
        %v992 = vpop.trf.xlu0
        %v994 = vsel %vm917, %v985, 0
        %v997 = vsel %vm917, %v986, 0
        %v1000 = vsel %vm924, %v898, 0
        %1002 = vmatprep.subr.bf16.mxu0 0
        %1003 = vmatpush1.bf16.msra.mxu0 %v1000
        %1004 = vmatprep.subr.bf16.mxu0 0
        %1005 = vmatpush1.bf16.msra.mxu0 0
        %1006 = vmatprep.subr.bf16.mxu0 0
        %1007 = vmatpush1.bf16.msra.mxu0 0
        %1008 = vmatprep.subr.bf16.mxu0 0
        %1009 = vmatpush1.bf16.msra.mxu0 0
        %1010 = vmatprep.subr.bf16.mxu0 0
        %1011 = vmatpush1.bf16.msra.mxu0 0
        %1012 = vmatprep.subr.bf16.mxu0 0
        %1013 = vmatpush1.bf16.msra.mxu0 0
        %1014 = vmatprep.subr.bf16.mxu0 0
        %1015 = vmatpush1.bf16.msra.mxu0 0
        %1016 = vmatprep.subr.bf16.mxu0 0
        %1017 = vmatpush1.bf16.msra.mxu0 0
        %1018 = vmatprep.subr.bf16.mxu0 0
        %1019 = vmatpush1.bf16.msra.mxu0 0
        %1020 = vmatprep.subr.bf16.mxu0 0
        %1021 = vmatpush1.bf16.msra.mxu0 0
        %1022 = vmatprep.subr.bf16.mxu0 0
        %1023 = vmatpush1.bf16.msra.mxu0 0
        %1024 = vmatprep.subr.bf16.mxu0 0
        %1025 = vmatpush1.bf16.msra.mxu0 0
        %1026 = vmatprep.subr.bf16.mxu0 0
        %1027 = vmatpush1.bf16.msra.mxu0 0
        %1028 = vmatprep.subr.bf16.mxu0 0
        %1029 = vmatpush1.bf16.msra.mxu0 0
        %1030 = vmatprep.subr.bf16.mxu0 0
        %1031 = vmatpush1.bf16.msra.mxu0 0
        %1032 = vmatprep.subr.bf16.mxu0 0
        %1033 = vmatpush1.bf16.msra.mxu0 0
        %1034 = vmatprep.mubr.bf16.mxu0 0
        %1035 = vmatmul.mubr.bf16.gmra.mrb[0].mxu0 %v994
        %v1036 = vpop.f32.mrb[0].mxu0
        %v1037 = vadd.f32 0.0, %v1036
        %v1038 = vpop.f32.mrb[0].mxu0
        %v1039 = vpop.f32.mrb[0].mxu0
        %v1040 = vadd.f32 0.0, %v1039
        %v1041 = vpop.f32.mrb[0].mxu0
        %1042 = vmatprep.mubr.bf16.mxu0 0
        %1043 = vmatmul.mubr.bf16.gmra.mrb[0].mxu0 %v997
        %v1044 = vpop.f32.mrb[0].mxu0
        %v1045 = vadd.f32 0.0, %v1044
        %v1046 = vpop.f32.mrb[0].mxu0
        %v1047 = vpop.f32.mrb[0].mxu0
        %v1048 = vadd.f32 0.0, %v1047
        %v1049 = vpop.f32.mrb[0].mxu0
        %1050 = vdwg.mxu0
        %1051 = vxpose.xlu0.c.b16.start [1/8] %v891, 128
        %1052 = vxpose.xlu0.c.b16.cont [2/8] 0, 128
        %1053 = vxpose.xlu0.c.b16.cont [3/8] 0, 128
        %1054 = vxpose.xlu0.c.b16.cont [4/8] 0, 128
        %1055 = vxpose.xlu0.c.b16.cont [5/8] 0, 128
        %1056 = vxpose.xlu0.c.b16.cont [6/8] 0, 128
        %1057 = vxpose.xlu0.c.b16.cont [7/8] 0, 128
        %1058 = vxpose.xlu0.c.b16.end [8/8] 0, 128
        %v1059 = vpop.trf.xlu0
        %v1060 = vpop.trf.xlu0
        %v1061 = vpop.trf.xlu0
        %v1062 = vpop.trf.xlu0
        %v1063 = vpop.trf.xlu0
        %v1064 = vpop.trf.xlu0
        %v1065 = vpop.trf.xlu0
        %v1066 = vpop.trf.xlu0
        %v1068 = vsel %vm917, %v1059, 0
        %v1071 = vsel %vm917, %v1060, 0
        %v1074 = vsel %vm924, %v899, 0
        %1076 = vmatprep.subr.bf16.mxu0 0
        %1077 = vmatpush1.bf16.msra.mxu0 %v1074
        %1078 = vmatprep.subr.bf16.mxu0 0
        %1079 = vmatpush1.bf16.msra.mxu0 0
        %1080 = vmatprep.subr.bf16.mxu0 0
        %1081 = vmatpush1.bf16.msra.mxu0 0
        %1082 = vmatprep.subr.bf16.mxu0 0
        %1083 = vmatpush1.bf16.msra.mxu0 0
        %1084 = vmatprep.subr.bf16.mxu0 0
        %1085 = vmatpush1.bf16.msra.mxu0 0
        %1086 = vmatprep.subr.bf16.mxu0 0
        %1087 = vmatpush1.bf16.msra.mxu0 0
        %1088 = vmatprep.subr.bf16.mxu0 0
        %1089 = vmatpush1.bf16.msra.mxu0 0
        %1090 = vmatprep.subr.bf16.mxu0 0
        %1091 = vmatpush1.bf16.msra.mxu0 0
        %1092 = vmatprep.subr.bf16.mxu0 0
        %1093 = vmatpush1.bf16.msra.mxu0 0
        %1094 = vmatprep.subr.bf16.mxu0 0
        %1095 = vmatpush1.bf16.msra.mxu0 0
        %1096 = vmatprep.subr.bf16.mxu0 0
        %1097 = vmatpush1.bf16.msra.mxu0 0
        %1098 = vmatprep.subr.bf16.mxu0 0
        %1099 = vmatpush1.bf16.msra.mxu0 0
        %1100 = vmatprep.subr.bf16.mxu0 0
        %1101 = vmatpush1.bf16.msra.mxu0 0
        %1102 = vmatprep.subr.bf16.mxu0 0
        %1103 = vmatpush1.bf16.msra.mxu0 0
        %1104 = vmatprep.subr.bf16.mxu0 0
        %1105 = vmatpush1.bf16.msra.mxu0 0
        %1106 = vmatprep.subr.bf16.mxu0 0
        %1107 = vmatpush1.bf16.msra.mxu0 0
        %1108 = vmatprep.mubr.bf16.mxu0 0
        %1109 = vmatmul.mubr.bf16.gmra.mrb[0].mxu0 %v1068
        %v1110 = vpop.f32.mrb[0].mxu0
        %v1111 = vadd.f32 0.0, %v1110
        %v1112 = vpop.f32.mrb[0].mxu0
        %v1113 = vpop.f32.mrb[0].mxu0
        %v1114 = vadd.f32 0.0, %v1113
        %v1115 = vpop.f32.mrb[0].mxu0
        %1116 = vmatprep.mubr.bf16.mxu0 0
        %1117 = vmatmul.mubr.bf16.gmra.mrb[0].mxu0 %v1071
        %v1118 = vpop.f32.mrb[0].mxu0
        %v1119 = vadd.f32 0.0, %v1118
        %v1120 = vpop.f32.mrb[0].mxu0
        %v1121 = vpop.f32.mrb[0].mxu0
        %v1122 = vadd.f32 0.0, %v1121
        %v1123 = vpop.f32.mrb[0].mxu0
        %1124 = vdwg.mxu0
        %1125 = vxpose.xlu0.c.b16.start [1/8] %v892, 128
        %1126 = vxpose.xlu0.c.b16.cont [2/8] 0, 128
        %1127 = vxpose.xlu0.c.b16.cont [3/8] 0, 128
        %1128 = vxpose.xlu0.c.b16.cont [4/8] 0, 128
        %1129 = vxpose.xlu0.c.b16.cont [5/8] 0, 128
        %1130 = vxpose.xlu0.c.b16.cont [6/8] 0, 128
        %1131 = vxpose.xlu0.c.b16.cont [7/8] 0, 128
        %1132 = vxpose.xlu0.c.b16.end [8/8] 0, 128
        %v1133 = vpop.trf.xlu0
        %v1134 = vpop.trf.xlu0
        %v1135 = vpop.trf.xlu0
        %v1136 = vpop.trf.xlu0
        %v1137 = vpop.trf.xlu0
        %v1138 = vpop.trf.xlu0
        %v1139 = vpop.trf.xlu0
        %v1140 = vpop.trf.xlu0
        %v1142 = vsel %vm917, %v1133, 0
        %v1145 = vsel %vm917, %v1134, 0
        %v1148 = vsel %vm924, %v900, 0
        %1150 = vmatprep.subr.bf16.mxu0 0
        %1151 = vmatpush1.bf16.msra.mxu0 %v1148
        %1152 = vmatprep.subr.bf16.mxu0 0
        %1153 = vmatpush1.bf16.msra.mxu0 0
        %1154 = vmatprep.subr.bf16.mxu0 0
        %1155 = vmatpush1.bf16.msra.mxu0 0
        %1156 = vmatprep.subr.bf16.mxu0 0
        %1157 = vmatpush1.bf16.msra.mxu0 0
        %1158 = vmatprep.subr.bf16.mxu0 0
        %1159 = vmatpush1.bf16.msra.mxu0 0
        %1160 = vmatprep.subr.bf16.mxu0 0
        %1161 = vmatpush1.bf16.msra.mxu0 0
        %1162 = vmatprep.subr.bf16.mxu0 0
        %1163 = vmatpush1.bf16.msra.mxu0 0
        %1164 = vmatprep.subr.bf16.mxu0 0
        %1165 = vmatpush1.bf16.msra.mxu0 0
        %1166 = vmatprep.subr.bf16.mxu0 0
        %1167 = vmatpush1.bf16.msra.mxu0 0
        %1168 = vmatprep.subr.bf16.mxu0 0
        %1169 = vmatpush1.bf16.msra.mxu0 0
        %1170 = vmatprep.subr.bf16.mxu0 0
        %1171 = vmatpush1.bf16.msra.mxu0 0
        %1172 = vmatprep.subr.bf16.mxu0 0
        %1173 = vmatpush1.bf16.msra.mxu0 0
        %1174 = vmatprep.subr.bf16.mxu0 0
        %1175 = vmatpush1.bf16.msra.mxu0 0
        %1176 = vmatprep.subr.bf16.mxu0 0
        %1177 = vmatpush1.bf16.msra.mxu0 0
        %1178 = vmatprep.subr.bf16.mxu0 0
        %1179 = vmatpush1.bf16.msra.mxu0 0
        %1180 = vmatprep.subr.bf16.mxu0 0
        %1181 = vmatpush1.bf16.msra.mxu0 0
        %1182 = vmatprep.mubr.bf16.mxu0 0
        %1183 = vmatmul.mubr.bf16.gmra.mrb[0].mxu0 %v1142
        %v1184 = vpop.f32.mrb[0].mxu0
        %v1185 = vadd.f32 0.0, %v1184
        %v1186 = vpop.f32.mrb[0].mxu0
        %v1187 = vpop.f32.mrb[0].mxu0
        %v1188 = vadd.f32 0.0, %v1187
        %v1189 = vpop.f32.mrb[0].mxu0
        %1190 = vmatprep.mubr.bf16.mxu0 0
        %1191 = vmatmul.mubr.bf16.gmra.mrb[0].mxu0 %v1145
        %v1192 = vpop.f32.mrb[0].mxu0
        %v1193 = vadd.f32 0.0, %v1192
        %v1194 = vpop.f32.mrb[0].mxu0
        %v1195 = vpop.f32.mrb[0].mxu0
        %v1196 = vadd.f32 0.0, %v1195
        %v1197 = vpop.f32.mrb[0].mxu0
        %1198 = vdwg.mxu0
        %v1199 = vmul.f32 %v963, %v317
        %v1200 = vmul.f32 %v966, %v318
        %v1201 = vmul.f32 %v971, %v319
        %v1202 = vmul.f32 %v974, %v320
        %v1203 = vmul.f32 %v1037, %v317
        %v1204 = vmul.f32 %v1040, %v318
        %v1205 = vmul.f32 %v1045, %v319
        %v1206 = vmul.f32 %v1048, %v320
        %v1207 = vmul.f32 %v1111, %v317
        %v1208 = vmul.f32 %v1114, %v318
        %v1209 = vmul.f32 %v1119, %v319
        %v1210 = vmul.f32 %v1122, %v320
        %v1211 = vmul.f32 %v1185, %v317
        %v1212 = vmul.f32 %v1188, %v318
        %v1213 = vmul.f32 %v1193, %v319
        %v1214 = vmul.f32 %v1196, %v320
        %v1215 = vpack.c.bf16 %v1200, %v1199
        %v1216 = vpack.c.bf16 %v1202, %v1201
        %v1217 = vpack.c.bf16 %v1204, %v1203
        %v1218 = vpack.c.bf16 %v1206, %v1205
        %v1219 = vpack.c.bf16 %v1208, %v1207
        %v1220 = vpack.c.bf16 %v1210, %v1209
        %v1221 = vpack.c.bf16 %v1212, %v1211
        %v1222 = vpack.c.bf16 %v1214, %v1213
        %v1224 = vsel %vm331, %v881, 0
        %1226 = vmatprep.subr.bf16.mxu0 0
        %1227 = vmatpush1.bf16.msra.mxu0 %v1215
        %1228 = vmatprep.subr.bf16.mxu0 0
        %1229 = vmatpush1.bf16.msra.mxu0 %v1216
        %1230 = vmatprep.subr.bf16.mxu0 0
        %1231 = vmatpush1.bf16.msra.mxu0 0
        %1232 = vmatprep.subr.bf16.mxu0 0
        %1233 = vmatpush1.bf16.msra.mxu0 0
        %1234 = vmatprep.subr.bf16.mxu0 0
        %1235 = vmatpush1.bf16.msra.mxu0 0
        %1236 = vmatprep.subr.bf16.mxu0 0
        %1237 = vmatpush1.bf16.msra.mxu0 0
        %1238 = vmatprep.subr.bf16.mxu0 0
        %1239 = vmatpush1.bf16.msra.mxu0 0
        %1240 = vmatprep.subr.bf16.mxu0 0
        %1241 = vmatpush1.bf16.msra.mxu0 0
        %1242 = vmatprep.subr.bf16.mxu0 0
        %1243 = vmatpush1.bf16.msra.mxu0 0
        %1244 = vmatprep.subr.bf16.mxu0 0
        %1245 = vmatpush1.bf16.msra.mxu0 0
        %1246 = vmatprep.subr.bf16.mxu0 0
        %1247 = vmatpush1.bf16.msra.mxu0 0
        %1248 = vmatprep.subr.bf16.mxu0 0
        %1249 = vmatpush1.bf16.msra.mxu0 0
        %1250 = vmatprep.subr.bf16.mxu0 0
        %1251 = vmatpush1.bf16.msra.mxu0 0
        %1252 = vmatprep.subr.bf16.mxu0 0
        %1253 = vmatpush1.bf16.msra.mxu0 0
        %1254 = vmatprep.subr.bf16.mxu0 0
        %1255 = vmatpush1.bf16.msra.mxu0 0
        %1256 = vmatprep.subr.bf16.mxu0 0
        %1257 = vmatpush1.bf16.msra.mxu0 0
        %1258 = vmatprep.mubr.bf16.mxu0 0
        %1259 = vmatmul.mubr.bf16.gmra.mrb[0].mxu0 %v1224
        %v1260 = vpop.f32.mrb[0].mxu0
        %v1261 = vadd.f32 0.0, %v1260
        %v1262 = vpop.f32.mrb[0].mxu0
        %v1263 = vpop.f32.mrb[0].mxu0
        %v1264 = vpop.f32.mrb[0].mxu0
        %1265 = vdwg.mxu0
        %v1267 = vsel %vm331, %v882, 0
        %1269 = vmatprep.subr.bf16.mxu0 0
        %1270 = vmatpush1.bf16.msra.mxu0 %v1217
        %1271 = vmatprep.subr.bf16.mxu0 0
        %1272 = vmatpush1.bf16.msra.mxu0 %v1218
        %1273 = vmatprep.subr.bf16.mxu0 0
        %1274 = vmatpush1.bf16.msra.mxu0 0
        %1275 = vmatprep.subr.bf16.mxu0 0
        %1276 = vmatpush1.bf16.msra.mxu0 0
        %1277 = vmatprep.subr.bf16.mxu0 0
        %1278 = vmatpush1.bf16.msra.mxu0 0
        %1279 = vmatprep.subr.bf16.mxu0 0
        %1280 = vmatpush1.bf16.msra.mxu0 0
        %1281 = vmatprep.subr.bf16.mxu0 0
        %1282 = vmatpush1.bf16.msra.mxu0 0
        %1283 = vmatprep.subr.bf16.mxu0 0
        %1284 = vmatpush1.bf16.msra.mxu0 0
        %1285 = vmatprep.subr.bf16.mxu0 0
        %1286 = vmatpush1.bf16.msra.mxu0 0
        %1287 = vmatprep.subr.bf16.mxu0 0
        %1288 = vmatpush1.bf16.msra.mxu0 0
        %1289 = vmatprep.subr.bf16.mxu0 0
        %1290 = vmatpush1.bf16.msra.mxu0 0
        %1291 = vmatprep.subr.bf16.mxu0 0
        %1292 = vmatpush1.bf16.msra.mxu0 0
        %1293 = vmatprep.subr.bf16.mxu0 0
        %1294 = vmatpush1.bf16.msra.mxu0 0
        %1295 = vmatprep.subr.bf16.mxu0 0
        %1296 = vmatpush1.bf16.msra.mxu0 0
        %1297 = vmatprep.subr.bf16.mxu0 0
        %1298 = vmatpush1.bf16.msra.mxu0 0
        %1299 = vmatprep.subr.bf16.mxu0 0
        %1300 = vmatpush1.bf16.msra.mxu0 0
        %1301 = vmatprep.mubr.bf16.mxu0 0
        %1302 = vmatmul.mubr.bf16.gmra.mrb[0].mxu0 %v1267
        %v1303 = vpop.f32.mrb[0].mxu0
        %v1304 = vadd.f32 0.0, %v1303
        %v1305 = vpop.f32.mrb[0].mxu0
        %v1306 = vpop.f32.mrb[0].mxu0
        %v1307 = vpop.f32.mrb[0].mxu0
        %1308 = vdwg.mxu0
        %v1310 = vsel %vm331, %v883, 0
        %1312 = vmatprep.subr.bf16.mxu0 0
        %1313 = vmatpush1.bf16.msra.mxu0 %v1219
        %1314 = vmatprep.subr.bf16.mxu0 0
        %1315 = vmatpush1.bf16.msra.mxu0 %v1220
        %1316 = vmatprep.subr.bf16.mxu0 0
        %1317 = vmatpush1.bf16.msra.mxu0 0
        %1318 = vmatprep.subr.bf16.mxu0 0
        %1319 = vmatpush1.bf16.msra.mxu0 0
        %1320 = vmatprep.subr.bf16.mxu0 0
        %1321 = vmatpush1.bf16.msra.mxu0 0
        %1322 = vmatprep.subr.bf16.mxu0 0
        %1323 = vmatpush1.bf16.msra.mxu0 0
        %1324 = vmatprep.subr.bf16.mxu0 0
        %1325 = vmatpush1.bf16.msra.mxu0 0
        %1326 = vmatprep.subr.bf16.mxu0 0
        %1327 = vmatpush1.bf16.msra.mxu0 0
        %1328 = vmatprep.subr.bf16.mxu0 0
        %1329 = vmatpush1.bf16.msra.mxu0 0
        %1330 = vmatprep.subr.bf16.mxu0 0
        %1331 = vmatpush1.bf16.msra.mxu0 0
        %1332 = vmatprep.subr.bf16.mxu0 0
        %1333 = vmatpush1.bf16.msra.mxu0 0
        %1334 = vmatprep.subr.bf16.mxu0 0
        %1335 = vmatpush1.bf16.msra.mxu0 0
        %1336 = vmatprep.subr.bf16.mxu0 0
        %1337 = vmatpush1.bf16.msra.mxu0 0
        %1338 = vmatprep.subr.bf16.mxu0 0
        %1339 = vmatpush1.bf16.msra.mxu0 0
        %1340 = vmatprep.subr.bf16.mxu0 0
        %1341 = vmatpush1.bf16.msra.mxu0 0
        %1342 = vmatprep.subr.bf16.mxu0 0
        %1343 = vmatpush1.bf16.msra.mxu0 0
        %1344 = vmatprep.mubr.bf16.mxu0 0
        %1345 = vmatmul.mubr.bf16.gmra.mrb[0].mxu0 %v1310
        %v1346 = vpop.f32.mrb[0].mxu0
        %v1347 = vadd.f32 0.0, %v1346
        %v1348 = vpop.f32.mrb[0].mxu0
        %v1349 = vpop.f32.mrb[0].mxu0
        %v1350 = vpop.f32.mrb[0].mxu0
        %1351 = vdwg.mxu0
        %v1353 = vsel %vm331, %v884, 0
        %1355 = vmatprep.subr.bf16.mxu0 0
        %1356 = vmatpush1.bf16.msra.mxu0 %v1221
        %1357 = vmatprep.subr.bf16.mxu0 0
        %1358 = vmatpush1.bf16.msra.mxu0 %v1222
        %1359 = vmatprep.subr.bf16.mxu0 0
        %1360 = vmatpush1.bf16.msra.mxu0 0
        %1361 = vmatprep.subr.bf16.mxu0 0
        %1362 = vmatpush1.bf16.msra.mxu0 0
        %1363 = vmatprep.subr.bf16.mxu0 0
        %1364 = vmatpush1.bf16.msra.mxu0 0
        %1365 = vmatprep.subr.bf16.mxu0 0
        %1366 = vmatpush1.bf16.msra.mxu0 0
        %1367 = vmatprep.subr.bf16.mxu0 0
        %1368 = vmatpush1.bf16.msra.mxu0 0
        %1369 = vmatprep.subr.bf16.mxu0 0
        %1370 = vmatpush1.bf16.msra.mxu0 0
        %1371 = vmatprep.subr.bf16.mxu0 0
        %1372 = vmatpush1.bf16.msra.mxu0 0
        %1373 = vmatprep.subr.bf16.mxu0 0
        %1374 = vmatpush1.bf16.msra.mxu0 0
        %1375 = vmatprep.subr.bf16.mxu0 0
        %1376 = vmatpush1.bf16.msra.mxu0 0
        %1377 = vmatprep.subr.bf16.mxu0 0
        %1378 = vmatpush1.bf16.msra.mxu0 0
        %1379 = vmatprep.subr.bf16.mxu0 0
        %1380 = vmatpush1.bf16.msra.mxu0 0
        %1381 = vmatprep.subr.bf16.mxu0 0
        %1382 = vmatpush1.bf16.msra.mxu0 0
        %1383 = vmatprep.subr.bf16.mxu0 0
        %1384 = vmatpush1.bf16.msra.mxu0 0
        %1385 = vmatprep.subr.bf16.mxu0 0
        %1386 = vmatpush1.bf16.msra.mxu0 0
        %1387 = vmatprep.mubr.bf16.mxu0 0
        %1388 = vmatmul.mubr.bf16.gmra.mrb[0].mxu0 %v1353
        %v1389 = vpop.f32.mrb[0].mxu0
        %v1390 = vadd.f32 0.0, %v1389
        %v1391 = vpop.f32.mrb[0].mxu0
        %v1392 = vpop.f32.mrb[0].mxu0
        %v1393 = vpop.f32.mrb[0].mxu0
        %1394 = vdwg.mxu0
        %v1395 = vmul.f32 %v1261, 0.25
        %v1396 = vmul.f32 %v1304, 0.25
        %v1397 = vmul.f32 %v1347, 0.25
        %v1398 = vmul.f32 %v1390, 0.25
        %1399 = vst.msk [vmem:[#allocation5] sm:$0xff] %vm331, %v1395
        %1400 = vst.msk [vmem:[#allocation5 + $0x8] sm:$0xff] %vm331, %v1396
        %1401 = vst.msk [vmem:[#allocation5 + $0x10] sm:$0xff] %vm331, %v1397
        %1402 = vst.msk [vmem:[#allocation5 + $0x18] sm:$0xff] %vm331, %v1398
        %v1403 = vld [vmem:[#allocation5] sm:$0xff]
        %v1404 = vmul.f32 %v1403, 0.5
        %v1405 = vadd.f32 %v1404, 0.0
        %vm1406 = vcmp.ge.f32.partialorder %v1405, 0.5
        %v1407 = vsel %vm1406, 1, 0
        %v1408 = vcvt.s32.f32 %v1407
        %1409 = vst.msk [vmem:[#allocation5] sm:$0xff] %vm331, %v1408
        %v1410 = vsel %vm1406, 0.0, %v1405
        %s1411 = scalar_lea.vmem [#allocation5], 8
        %v1412 = vld [vmem:[%s1411] sm:$0xff]
        %v1413 = vsub.f32 %v1412, %v1410
        %v1414 = vmul.f32 %v1413, 0.5
        %v1415 = vadd.f32 %v1410, %v1414
        %vm1416 = vcmp.ge.f32.partialorder %v1415, 0.5
        %v1417 = vsel %vm1416, 1, 0
        %v1418 = vcvt.s32.f32 %v1417
        %1419 = vst.msk [vmem:[%s1411] sm:$0xff] %vm331, %v1418
        %v1420 = vsel %vm1416, 0.0, %v1415
        %s1421 = scalar_lea.vmem [#allocation5], 16
        %v1422 = vld [vmem:[%s1421] sm:$0xff]
        %v1423 = vsub.f32 %v1422, %v1420
        %v1424 = vmul.f32 %v1423, 0.5
        %v1425 = vadd.f32 %v1420, %v1424
        %vm1426 = vcmp.ge.f32.partialorder %v1425, 0.5
        %v1427 = vsel %vm1426, 1, 0
        %v1428 = vcvt.s32.f32 %v1427
        %1429 = vst.msk [vmem:[%s1421] sm:$0xff] %vm331, %v1428
        %v1430 = vsel %vm1426, 0.0, %v1425
        %s1431 = scalar_lea.vmem [#allocation5], 24
        %v1432 = vld [vmem:[%s1431] sm:$0xff]
        %v1433 = vsub.f32 %v1432, %v1430
        %v1434 = vmul.f32 %v1433, 0.5
        %v1435 = vadd.f32 %v1430, %v1434
        %vm1436 = vcmp.ge.f32.partialorder %v1435, 0.5
        %v1437 = vsel %vm1436, 1, 0
        %v1438 = vcvt.s32.f32 %v1437
        %1439 = vst.msk [vmem:[%s1431] sm:$0xff] %vm331, %v1438
        %v1440 = vld [vmem:[#allocation5] sm:$0xff]
        %v1441 = vld [vmem:[#allocation5 + $0x8] sm:$0xff]
        %v1442 = vld [vmem:[#allocation5 + $0x10] sm:$0xff]
        %v1443 = vld [vmem:[#allocation5 + $0x18] sm:$0xff]
        %v1445 = vlaneseq
        %v1446 = vshrl.u32 %v1445, 7
        %v1447 = vsub.s32 0, %v1446
        %v1448 = vrot.slane %v314, %v1447
        %v1451 = vsel %vm331, %v1440, 0
        %v1454 = vsel %vm331, %v1441, 0
        %v1457 = vsel %vm331, %v1442, 0
        %v1460 = vsel %vm331, %v1443, 0
        %1462 = vmatprep.subr.mxu0 0.0
        %1463 = vmatpush1.msra.mxu0 %v310
        %1464 = vmatprep.subr.mxu0 0.0
        %1465 = vmatpush1.msra.mxu0 %v311
        %1466 = vmatprep.subr.mxu0 0.0
        %1467 = vmatpush1.msra.mxu0 %v312
        %1468 = vmatprep.subr.mxu0 0.0
        %1469 = vmatpush1.msra.mxu0 %v313
        %1470 = vmatprep.subr.mxu0 0.0
        %1471 = vmatpush1.msra.mxu0 0.0
        %1472 = vmatprep.subr.mxu0 0.0
        %1473 = vmatpush1.msra.mxu0 0.0
        %1474 = vmatprep.subr.mxu0 0.0
        %1475 = vmatpush1.msra.mxu0 0.0
        %1476 = vmatprep.subr.mxu0 0.0
        %1477 = vmatpush1.msra.mxu0 0.0
        %1478 = vmatprep.subr.mxu0 0.0
        %1479 = vmatpush1.msra.mxu0 0.0
        %1480 = vmatprep.subr.mxu0 0.0
        %1481 = vmatpush1.msra.mxu0 0.0
        %1482 = vmatprep.subr.mxu0 0.0
        %1483 = vmatpush1.msra.mxu0 0.0
        %1484 = vmatprep.subr.mxu0 0.0
        %1485 = vmatpush1.msra.mxu0 0.0
        %1486 = vmatprep.subr.mxu0 0.0
        %1487 = vmatpush1.msra.mxu0 0.0
        %1488 = vmatprep.subr.mxu0 0.0
        %1489 = vmatpush1.msra.mxu0 0.0
        %1490 = vmatprep.subr.mxu0 0.0
        %1491 = vmatpush1.msra.mxu0 0.0
        %1492 = vmatprep.subr.mxu0 0.0
        %1493 = vmatpush1.msra.mxu0 0.0
        %1494 = vmatprep.subr.mxu0 0.0
        %1495 = vmatpush1.msra.mxu0 0.0
        %1496 = vmatprep.subr.mxu0 0.0
        %1497 = vmatpush1.msra.mxu0 0.0
        %1498 = vmatprep.subr.mxu0 0.0
        %1499 = vmatpush1.msra.mxu0 0.0
        %1500 = vmatprep.subr.mxu0 0.0
        %1501 = vmatpush1.msra.mxu0 0.0
        %1502 = vmatprep.subr.mxu0 0.0
        %1503 = vmatpush1.msra.mxu0 0.0
        %1504 = vmatprep.subr.mxu0 0.0
        %1505 = vmatpush1.msra.mxu0 0.0
        %1506 = vmatprep.subr.mxu0 0.0
        %1507 = vmatpush1.msra.mxu0 0.0
        %1508 = vmatprep.subr.mxu0 0.0
        %1509 = vmatpush1.msra.mxu0 0.0
        %1510 = vmatprep.subr.mxu0 0.0
        %1511 = vmatpush1.msra.mxu0 0.0
        %1512 = vmatprep.subr.mxu0 0.0
        %1513 = vmatpush1.msra.mxu0 0.0
        %1514 = vmatprep.subr.mxu0 0.0
        %1515 = vmatpush1.msra.mxu0 0.0
        %1516 = vmatprep.subr.mxu0 0.0
        %1517 = vmatpush1.msra.mxu0 0.0
        %1518 = vmatprep.subr.mxu0 0.0
        %1519 = vmatpush1.msra.mxu0 0.0
        %1520 = vmatprep.subr.mxu0 0.0
        %1521 = vmatpush1.msra.mxu0 0.0
        %1522 = vmatprep.subr.mxu0 0.0
        %1523 = vmatpush1.msra.mxu0 0.0
        %1524 = vmatprep.subr.mxu0 0.0
        %1525 = vmatpush1.msra.mxu0 0.0
        %1526 = vmatprep.mubr.f32.mxu0 0.0
        %1527 = vmatmul.mubr.f32.gmra.mrb[0].mxu0 %v1451
        %v1528 = vpop.f32.mrb[0].mxu0
        %v1529 = vadd.f32 %v1448, %v1528
        %v1530 = vpop.f32.mrb[0].mxu0
        %1531 = vmatprep.mubr.f32.mxu0 0.0
        %1532 = vmatmul.mubr.f32.gmra.mrb[0].mxu0 %v1454
        %v1533 = vpop.f32.mrb[0].mxu0
        %v1534 = vadd.f32 %v1448, %v1533
        %v1535 = vpop.f32.mrb[0].mxu0
        %1536 = vmatprep.mubr.f32.mxu0 0.0
        %1537 = vmatmul.mubr.f32.gmra.mrb[0].mxu0 %v1457
        %v1538 = vpop.f32.mrb[0].mxu0
        %v1539 = vadd.f32 %v1448, %v1538
        %v1540 = vpop.f32.mrb[0].mxu0
        %1541 = vmatprep.mubr.f32.mxu0 0.0
        %1542 = vmatmul.mubr.f32.gmra.mrb[0].mxu0 %v1460
        %v1543 = vpop.f32.mrb[0].mxu0
        %v1544 = vadd.f32 %v1448, %v1543
        %v1545 = vpop.f32.mrb[0].mxu0
        %1546 = vdwg.mxu0
        %v1547 = vsel %vm331, %v1529, 0.0
        %1548 = vadd.xlane.f32.xlu0 %v1547
        %v1549 = vpop.xlane.xlu0 %1548
        %v1550 = vsel %vm331, %v1534, 0.0
        %1551 = vadd.xlane.f32.xlu0 %v1550
        %v1552 = vpop.xlane.xlu0 %1551
        %v1553 = vsel %vm331, %v1539, 0.0
        %1554 = vadd.xlane.f32.xlu0 %v1553
        %v1555 = vpop.xlane.xlu0 %1554
        %v1556 = vsel %vm331, %v1544, 0.0
        %1557 = vadd.xlane.f32.xlu0 %v1556
        %v1558 = vpop.xlane.xlu0 %1557
        %v1559 = vmul.f32 %v1549, %v441
        %v1560 = vmul.f32 %v1552, %v441
        %v1561 = vmul.f32 %v1555, %v441
        %v1562 = vmul.f32 %v1558, %v441
        %v1563 = vmul.f32 %v1529, %v1529
        %v1564 = vmul.f32 %v1534, %v1534
        %v1565 = vmul.f32 %v1539, %v1539
        %v1566 = vmul.f32 %v1544, %v1544
        %v1567 = vsel %vm331, %v1563, 0.0
        %1568 = vadd.xlane.f32.xlu0 %v1567
        %v1569 = vpop.xlane.xlu0 %1568
        %v1570 = vsel %vm331, %v1564, 0.0
        %1571 = vadd.xlane.f32.xlu0 %v1570
        %v1572 = vpop.xlane.xlu0 %1571
        %v1573 = vsel %vm331, %v1565, 0.0
        %1574 = vadd.xlane.f32.xlu0 %v1573
        %v1575 = vpop.xlane.xlu0 %1574
        %v1576 = vsel %vm331, %v1566, 0.0
        %1577 = vadd.xlane.f32.xlu0 %v1576
        %v1578 = vpop.xlane.xlu0 %1577
        %v1579 = vmul.f32 %v1569, %v441
        %v1580 = vmul.f32 %v1572, %v441
        %v1581 = vmul.f32 %v1575, %v441
        %v1582 = vmul.f32 %v1578, %v441
        %v1583 = vmul.f32 %v1559, %v1559
        %v1584 = vmul.f32 %v1560, %v1560
        %v1585 = vmul.f32 %v1561, %v1561
        %v1586 = vmul.f32 %v1562, %v1562
        %v1587 = vsub.f32 %v1579, %v1583
        %v1588 = vsub.f32 %v1580, %v1584
        %v1589 = vsub.f32 %v1581, %v1585
        %v1590 = vsub.f32 %v1582, %v1586
        %v1591 = vsub.f32 %v1529, %v1559
        %v1592 = vsub.f32 %v1534, %v1560
        %v1593 = vsub.f32 %v1539, %v1561
        %v1594 = vsub.f32 %v1544, %v1562
        %v1595 = vadd.f32 %v1587, 1e-05
        %v1596 = vadd.f32 %v1588, 1e-05
        %v1597 = vadd.f32 %v1589, 1e-05
        %v1598 = vadd.f32 %v1590, 1e-05
        %v1599 = vrsqrt.pop %v1595
        %v1600 = vrsqrt.pop %v1596
        %v1601 = vrsqrt.pop %v1597
        %v1602 = vrsqrt.pop %v1598
        %v1603 = vmul.f32 %v1591, %v1599
        %v1604 = vmul.f32 %v1592, %v1600
        %v1605 = vmul.f32 %v1593, %v1601
        %v1606 = vmul.f32 %v1594, %v1602
        %v1607 = vlaneseq
        %v1608 = vshrl.u32 %v1607, 7
        %v1609 = vsub.s32 3, %v1608
        %v1610 = vrot.slane %v315, %v1609
        %v1611 = vmul.f32 %v1603, %v1610
        %v1612 = vmul.f32 %v1604, %v1610
        %v1613 = vmul.f32 %v1605, %v1610
        %v1614 = vmul.f32 %v1606, %v1610
        %v1615 = vlaneseq
        %v1616 = vshrl.u32 %v1615, 7
        %v1617 = vsub.s32 3, %v1616
        %v1618 = vrot.slane %v316, %v1617
        %v1619 = vadd.f32 %v1611, %v1618
        %v1620 = vadd.f32 %v1612, %v1618
        %v1621 = vadd.f32 %v1613, %v1618
        %v1622 = vadd.f32 %v1614, %v1618
        %1623 = vst.msk [vmem:[#allocation5] sm:$0xff] %vm331, %v1619
        %1624 = vst.msk [vmem:[#allocation5 + $0x8] sm:$0xff] %vm331, %v1620
        %1625 = vst.msk [vmem:[#allocation5 + $0x10] sm:$0xff] %vm331, %v1621
        %1626 = vst.msk [vmem:[#allocation5 + $0x18] sm:$0xff] %vm331, %v1622
        %v1627 = vld [vmem:[#allocation5] sm:$0xff]
        %v1628 = vmul.f32 %v1627, 0.5
        %v1629 = vadd.f32 %v1628, 0.0
        %vm1630 = vcmp.ge.f32.partialorder %v1629, 1.0
        %v1631 = vsel %vm1630, 1, 0
        %v1632 = vcvt.s32.f32 %v1631
        %1633 = vst.msk [vmem:[%s298] sm:$0xff] %vm331, %v1632
        %v1634 = vsel %vm1630, 0.0, %v1629
        %v1635 = vld [vmem:[%s1411] sm:$0xff]
        %v1636 = vsub.f32 %v1635, %v1634
        %v1637 = vmul.f32 %v1636, 0.5
        %v1638 = vadd.f32 %v1634, %v1637
        %vm1639 = vcmp.ge.f32.partialorder %v1638, 1.0
        %v1640 = vsel %vm1639, 1, 0
        %v1641 = vcvt.s32.f32 %v1640
        %s1642 = scalar_lea.vmem %s298, 8 [#allocation6]
        %1643 = vst.msk [vmem:[%s1642] sm:$0xff] %vm331, %v1641
        %v1644 = vsel %vm1639, 0.0, %v1638
        %v1645 = vld [vmem:[%s1421] sm:$0xff]
        %v1646 = vsub.f32 %v1645, %v1644
        %v1647 = vmul.f32 %v1646, 0.5
        %v1648 = vadd.f32 %v1644, %v1647
        %vm1649 = vcmp.ge.f32.partialorder %v1648, 1.0
        %v1650 = vsel %vm1649, 1, 0
        %v1651 = vcvt.s32.f32 %v1650
        %s1652 = scalar_lea.vmem %s298, 16 [#allocation6]
        %1653 = vst.msk [vmem:[%s1652] sm:$0xff] %vm331, %v1651
        %v1654 = vsel %vm1649, 0.0, %v1648
        %v1655 = vld [vmem:[%s1431] sm:$0xff]
        %v1656 = vsub.f32 %v1655, %v1654
        %v1657 = vmul.f32 %v1656, 0.5
        %v1658 = vadd.f32 %v1654, %v1657
        %vm1659 = vcmp.ge.f32.partialorder %v1658, 1.0
        %v1660 = vsel %vm1659, 1, 0
        %v1661 = vcvt.s32.f32 %v1660
        %s1662 = scalar_lea.vmem %s298, 24 [#allocation6]
        %1663 = vst.msk [vmem:[%s1662] sm:$0xff] %vm331, %v1661
        %s1664 = sand.u32 %s203, 1
        %s1665 = scalar_lea.sflag [#allocation7], %s1664
        %s1666 = sand.u32 %s203, 1
        %s1667 = smul.addr %s1666, 32
        %s1668 = scalar_lea.vmem [#allocation6], %s1667
        // Predicated region
        $region53: #{spiking_self_attention_forward.1} parent=51 // pred_check
          %p1669 = pneg %p213
        $region54: #{spiking_self_attention_forward.1} parent=51 // pred_check_branch
          %1671 = sbr.rel (%p1669) target = $region56
        $region55: #{spiking_self_attention_forward.1} parent=51 // pred_region
          %s1673 = ssub.s32 512, 512
          %1674 = vsyncadd %s1665, %s1673
          %s1675 = smul.addr %s22, 4
          %s1676 = smul.addr %s1675, 128
          %s1677 = scalar_lea.hbm %s8, %s1676
          %s1678 = sshll.u32 %s1668, 4
          %s1679 = int_to_ptr.vmem [resolvable:$true] %s1678
          %1684 = dma.vmem_to_hbm [thread:$0]  %s1679, 512, %s1677, %s1665, 128, 128, 8
        $region56: #{spiking_self_attention_forward.1} parent=51 // pred_fallthru
          _
      $region52: #{spiking_self_attention_forward.1} parent=5 // pred_fallthru
        _
      %p1685 = scmp.le.s32.totalorder 2, %s17
      // Predicated region
      $region57: #{spiking_self_attention_forward.1} parent=5 // pred_check
        %p1686 = pneg %p1685
      $region58: #{spiking_self_attention_forward.1} parent=5 // pred_check_branch
        %1688 = sbr.rel (%p1686) target = $region60
      $region59: #{spiking_self_attention_forward.1} parent=5 // pred_region
        %s1689 = ssub.s32 %s17, 2
        // Predicated region
        $region61: #{spiking_self_attention_forward.1} parent=59 // pred_check
          %p1690 = pneg %p219
        $region62: #{spiking_self_attention_forward.1} parent=59 // pred_check_branch
          %1692 = sbr.rel (%p1690) target = $region64
        $region63: #{spiking_self_attention_forward.1} parent=59 // pred_region
          %s1693 = sand.u32 %s204, 1
          %s1694 = scalar_lea.sflag [#allocation7], %s1693
          %s1695 = sand.u32 %s204, 1
          %s1696 = smul.addr %s1695, 32
          %s1697 = scalar_lea.vmem [#allocation6], %s1696
          %1698 = dma.done %s1694, 512
        $region64: #{spiking_self_attention_forward.1} parent=59 // pred_fallthru
          _
      $region60: #{spiking_self_attention_forward.1} parent=5 // pred_fallthru
        _
    $region6: #{spiking_self_attention_forward.1} parent=1 // loop_footer
      %s21 = sadd.s32 1, %s17
    $region7: #{spiking_self_attention_forward.1} parent=1 // loop_footer_branch
      %16 = sbr.rel target = $region3
    $region8: #{spiking_self_attention_forward.1} parent=1 // loop_exit
      _
    %1699 = vsyncpa [#allocation7], 1
    %s1700 = scalar_lea.sflag [#allocation7], 1
    %1701 = vsyncpa %s1700, 1

</llo_original>
